<compile_context>
chip_gen: v7x
topology: tpu7x:2x2x1
jax: 0.10.0
libtpu: 0.0.40
codegen_flags: <defaults>
</compile_context>

<pallas_src>
import math
import functools

import jax
import jax.numpy as jnp
from jax import lax
from jax.experimental import pallas as pl
from jax.experimental.pallas import tpu as pltpu


# ----------------------------- kernel -------------------------------------- #

def _layernorm(x, gamma, beta, eps=1e-5):
    # PyTorch nn.LayerNorm: population variance, eps inside sqrt.
    mean = jnp.mean(x, axis=-1, keepdims=True)
    var = jnp.mean(jnp.square(x - mean), axis=-1, keepdims=True)
    return (x - mean) * lax.rsqrt(var + eps) * gamma + beta


def transformer_kernel(x_ref, wqkv_ref, w_up_ref, w_down_ref, vec_ref,
                       w_out_ref, b_out_ref, o_ref, x_sc,
                       *, batch, seq, n_heads, block_size):
    """Whole transformer stack, all batch rows per step.  grid = (layer,)."""
    l = pl.program_id(0)
    n_layers = pl.num_programs(0)

    # Layer 0: load the embedded input (all batch rows) into the carried scratch.
    @pl.when(l == 0)
    def _():
        x_sc[...] = x_ref[...].astype(jnp.float32)

    x = x_sc[...]                                   # (B*T, D) f32, carried
    BT, D = x.shape
    B, T, H = batch, seq, n_heads
    Dh = D // H
    scale = 1.0 / math.sqrt(block_size)             # reference uses sqrt(block_size)

    # Packed per-layer vectors: one DMA instead of six.
    vec = vec_ref[...]                              # (8, >=128) f32
    ln1_g = vec[0:1, :D]
    ln1_b = vec[1:2, :D]
    ln2_g = vec[2:3, :D]
    ln2_b = vec[3:4, :D]
    b_down = vec[4:5, :D]
    b_up = vec[5:6, :4 * D]

    # --- fused QKV projection: one lane-dense (B*T, 3D) bf16 MXU matmul ---
    qkv = jnp.dot(x.astype(jnp.bfloat16), wqkv_ref[...],
                  preferred_element_type=jnp.float32)        # (B*T, 3D) f32
    qkv = qkv.reshape(B, T, 3 * D)                           # leading-dim split (free)

    # --- causal attention, batch-leading 3-D einsums (documented Mosaic path) ---
    row = lax.broadcasted_iota(jnp.int32, (T, T), 0)
    col = lax.broadcasted_iota(jnp.int32, (T, T), 1)
    causal = (col <= row)[None, :, :]                        # (1, T, T)

    attn_heads = []
    for h in range(H):
        q_h = qkv[:, :, h * Dh:(h + 1) * Dh] * scale         # (B, T, Dh)
        k_h = qkv[:, :, D + h * Dh:D + (h + 1) * Dh]
        v_h = qkv[:, :, 2 * D + h * Dh:2 * D + (h + 1) * Dh]
        s = jnp.einsum('btd,bsd->bts', q_h, k_h,
                       preferred_element_type=jnp.float32)   # (B, T, T)
        s = jnp.where(causal, s, -jnp.inf)
        m = jnp.max(s, axis=-1, keepdims=True)
        p = jnp.exp(s - m)
        # divide -> EUP reciprocal + VPU multiply (frees the VALU slot)
        p = p * pl.reciprocal(jnp.sum(p, axis=-1, keepdims=True), approx=True)
        attn_heads.append(jnp.einsum('bts,bsd->btd', p, v_h,
                                     preferred_element_type=jnp.float32))
    attn = jnp.concatenate(attn_heads, axis=-1).reshape(BT, D)   # head-concat order

    # --- residual + LayerNorm1 ---
    x1 = _layernorm(x + attn, ln1_g, ln1_b)

    # --- MLP: relu(x @ W_up + b_up) @ W_down + b_down (bf16 operands, f32 acc) ---
    hdn = jnp.maximum(
        jnp.dot(x1.astype(jnp.bfloat16), w_up_ref[...],
                preferred_element_type=jnp.float32) + b_up, 0.0)
    mlp = jnp.dot(hdn.astype(jnp.bfloat16), w_down_ref[...],
                  preferred_element_type=jnp.float32) + b_down

    # --- residual + LayerNorm2; carry to the next layer step ---
    x2 = _layernorm(x1 + mlp, ln2_g, ln2_b)
    x_sc[...] = x2

    # Final layer: fused vocab projection, lane-dense (V padded to 128) store.
    @pl.when(l == n_layers - 1)
    def _():
        logits = jnp.dot(x2.astype(jnp.bfloat16), w_out_ref[...],
                         preferred_element_type=jnp.float32) + b_out_ref[...]
        o_ref[...] = logits.astype(o_ref.dtype)


# ----------------------------- wrapper -------------------------------------- #

def transformer_forward(token_ids, params, config):
    B, T = token_ids.shape
    D = config['d_embed']
    L = config['n_layers']
    V = params['w_out'].shape[1]
    Vp = ((V + 127) // 128) * 128                       # lane-dense vocab
    Wv = max(((4 * D + 127) // 128) * 128, 128)         # packed-vector lane width

    # Embedding gather stays in the JAX wrapper.
    tok = jnp.take(params['embedding'], token_ids, axis=0)      # (B, T, D)
    pos = params['position_embedding'][:T][None, :, :]          # (1, T, D)
    x = (tok + pos).astype(jnp.bfloat16).reshape(B * T, D)      # bf16 activations

    # Pack the six small per-layer vectors into one (L, 8, Wv) array -> 1 DMA/step.
    vec = jnp.zeros((L, 8, Wv), jnp.float32)
    vec = vec.at[:, 0, :D].set(params['ln1_g'])
    vec = vec.at[:, 1, :D].set(params['ln1_b'])
    vec = vec.at[:, 2, :D].set(params['ln2_g'])
    vec = vec.at[:, 3, :D].set(params['ln2_b'])
    vec = vec.at[:, 4, :D].set(params['b_down'])
    vec = vec.at[:, 5, :4 * D].set(params['b_up'])

    # Zero-pad the output head to a lane-dense width (exact: padded cols are 0).
    w_out_p = jnp.zeros((D, Vp), jnp.bfloat16).at[:, :V].set(params['w_out'])
    b_out_p = jnp.zeros((1, Vp), jnp.float32).at[0, :V].set(params['b_out'])

    kernel = functools.partial(transformer_kernel,
                               batch=B, seq=T,
                               n_heads=config['n_heads'],
                               block_size=config['block_size'])

    const_map = lambda l: (0, 0)            # fetched once (constant block index)
    layer_map = lambda l: (l, 0, 0)         # per-layer stacked weights

    in_specs = [
        pl.BlockSpec((B * T, D), const_map),           # x (bf16), fetched once
        pl.BlockSpec((None, D, 3 * D), layer_map),     # wqkv (bf16)
        pl.BlockSpec((None, D, 4 * D), layer_map),     # w_up (bf16)
        pl.BlockSpec((None, 4 * D, D), layer_map),     # w_down (bf16)
        pl.BlockSpec((None, 8, Wv), layer_map),        # packed LN/bias vectors
        pl.BlockSpec((D, Vp), const_map),              # w_out (bf16, padded)
        pl.BlockSpec((1, Vp), const_map),              # b_out (padded)
    ]

    logits_p = pl.pallas_call(
        kernel,
        out_shape=jax.ShapeDtypeStruct((B * T, Vp), jnp.float32),
        grid=(L,),
        in_specs=in_specs,
        out_specs=pl.BlockSpec((B * T, Vp), const_map),
        scratch_shapes=[pltpu.VMEM((B * T, D), jnp.float32)],   # carried activation
        compiler_params=pltpu.CompilerParams(
            dimension_semantics=("arbitrary",),
            # Safe on every generation (v7x has 64 MiB physical); raise toward
            # 64-96 MiB on v5e/v6e when scaling tiles up.
            vmem_limit_bytes=32 * 1024 * 1024,
        ),
    )(x, params['wqkv'], params['w_up'], params['w_down'], vec, w_out_p, b_out_p)

    return logits_p[:, :V].reshape(B, T, V)


# --------------------------- pure-JAX reference ----------------------------- #

def ref_forward(token_ids, params, config):
    B, T = token_ids.shape
    D = config['d_embed']
    H = config['n_heads']
    Dh = D // H
    scale = 1.0 / math.sqrt(config['block_size'])
    bf16, f32 = jnp.bfloat16, jnp.float32

    x = jnp.take(params['embedding'], token_ids, axis=0) + \
        params['position_embedding'][:T][None, :, :]
    x = x.astype(bf16).astype(f32)                        # match kernel input cast

    causal = jnp.tril(jnp.ones((T, T), dtype=bool))
    for l in range(config['n_layers']):
        qkv = jnp.dot(x.astype(bf16), params['wqkv'][l],
                      preferred_element_type=f32)          # (B, T, 3D)
        q = qkv[..., :D].reshape(B, T, H, Dh) * scale
        k = qkv[..., D:2 * D].reshape(B, T, H, Dh)
        v = qkv[..., 2 * D:].reshape(B, T, H, Dh)
        s = jnp.einsum('bthd,bshd->bhts', q, k, preferred_element_type=f32)
        s = jnp.where(causal[None, None], s, -jnp.inf)
        p = jax.nn.softmax(s, axis=-1)
        attn = jnp.einsum('bhts,bshd->bthd', p, v,
                          preferred_element_type=f32).reshape(B, T, D)
        x = _layernorm(x + attn, params['ln1_g'][l], params['ln1_b'][l])
        hdn = jnp.maximum(jnp.dot(x.astype(bf16), params['w_up'][l],
                                  preferred_element_type=f32) + params['b_up'][l], 0.0)
        mlp = jnp.dot(hdn.astype(bf16), params['w_down'][l],
                      preferred_element_type=f32) + params['b_down'][l]
        x = _layernorm(x + mlp, params['ln2_g'][l], params['ln2_b'][l])

    return jnp.dot(x.astype(bf16), params['w_out'],
                   preferred_element_type=f32) + params['b_out']


# ------------------------------- params ------------------------------------ #

def init_params(key, vocab_size, config):
    D = config['d_embed']
    S = config['block_size']
    L = config['n_layers']

    def nrm(k, shape, scale=0.02, dtype=jnp.float32):
        return (scale * jax.random.normal(k, shape)).astype(dtype)

    keys = iter(jax.random.split(key, 10))
    return {
        'embedding': nrm(next(keys), (vocab_size, D), 1.0),
        'position_embedding': nrm(next(keys), (S, D), 1.0),
        # per-layer weights stacked on a leading L axis; matmul weights in bf16.
        # wqkv columns: [Q heads 0..H-1 | K heads | V heads], Dh cols per head.
        'wqkv': nrm(next(keys), (L, D, 3 * D), 0.02, jnp.bfloat16),
        'w_up': nrm(next(keys), (L, D, 4 * D), 0.02, jnp.bfloat16),
        'b_up': nrm(next(keys), (L, 4 * D)),
        'w_down': nrm(next(keys), (L, 4 * D, D), 0.02, jnp.bfloat16),
        'b_down': nrm(next(keys), (L, D)),
        'ln1_g': jnp.ones((L, D), jnp.float32),
        'ln1_b': jnp.zeros((L, D), jnp.float32),
        'ln2_g': jnp.ones((L, D), jnp.float32),
        'ln2_b': jnp.zeros((L, D), jnp.float32),
        'w_out': nrm(next(keys), (D, vocab_size), 0.02, jnp.bfloat16),
        'b_out': nrm(next(keys), (vocab_size,)),
    }


# -------------------------------- main -------------------------------------- #

if __name__ == "__main__":
    config = {'d_embed': 32, 'n_heads': 4, 'block_size': 8, 'n_layers': 2,
              'device': None}
    vocab_size = 64
    B, T = 2, config['block_size']

    key = jax.random.PRNGKey(0)
    k_tok, k_par = jax.random.split(key)
    token_ids = jax.random.randint(k_tok, (B, T), 0, vocab_size, dtype=jnp.int32)
    params = init_params(k_par, vocab_size, config)

    logits = jax.block_until_ready(transformer_forward(token_ids, params, config))
    assert logits.shape == (B, T, vocab_size), logits.shape

    ref = jax.block_until_ready(ref_forward(token_ids, params, config))
    max_err = float(jnp.max(jnp.abs(logits - ref)))
    assert jnp.allclose(logits, ref, atol=1e-2, rtol=1e-2), max_err

    print("KERNEL_OK")
</pallas_src>

<mosaic_0001>
module attributes {stable_mosaic.version = 11 : i64} {
  func.func @transformer_kernel(%arg0: i32, %arg1: memref<16x32xbf16, #tpu.memory_space<vmem>>, %arg2: memref<1x32x96xbf16, #tpu.memory_space<vmem>>, %arg3: memref<1x32x128xbf16, #tpu.memory_space<vmem>>, %arg4: memref<1x128x32xbf16, #tpu.memory_space<vmem>>, %arg5: memref<1x8x128xf32, #tpu.memory_space<vmem>>, %arg6: memref<32x128xbf16, #tpu.memory_space<vmem>>, %arg7: memref<1x128xf32, #tpu.memory_space<vmem>>, %arg8: memref<16x128xf32, #tpu.memory_space<vmem>>, %arg9: memref<16x32xf32, #tpu.memory_space<vmem>>) attributes {dimension_semantics = [#tpu.dimension_semantics<arbitrary>], iteration_bounds = array<i64: 2>, scalar_prefetch = 0 : i64, scratch_operands = 1 : i64, tpu.core_type = #tpu.core_type<tc>, window_params = [{pipeline_mode = #tpu.pipeline_mode<synchronous>, transform_indices = @transform_0, window_bounds = array<i64: 16, 32>}, {transform_indices = @transform_1, window_bounds = array<i64: 1, 32, 96>}, {transform_indices = @transform_2, window_bounds = array<i64: 1, 32, 128>}, {transform_indices = @transform_3, window_bounds = array<i64: 1, 128, 32>}, {transform_indices = @transform_4, window_bounds = array<i64: 1, 8, 128>}, {pipeline_mode = #tpu.pipeline_mode<synchronous>, transform_indices = @transform_5, window_bounds = array<i64: 32, 128>}, {pipeline_mode = #tpu.pipeline_mode<synchronous>, transform_indices = @transform_6, window_bounds = array<i64: 1, 128>}, {pipeline_mode = #tpu.pipeline_mode<synchronous>, transform_indices = @transform_7, window_bounds = array<i64: 16, 128>}]} {
    %c0_i32 = arith.constant 0 : i32
    %0 = arith.cmpi eq, %arg0, %c0_i32 : i32
    %1 = arith.extui %0 : i1 to i32
    %c0_i32_0 = arith.constant 0 : i32
    %2 = arith.cmpi ne, %1, %c0_i32_0 : i32
    scf.if %2 {
      %c0_54 = arith.constant 0 : index
      %c0_55 = arith.constant 0 : index
      %171 = vector.load %arg1[%c0_54, %c0_55] : memref<16x32xbf16, #tpu.memory_space<vmem>>, vector<16x32xbf16>
      %172 = arith.extf %171 : vector<16x32xbf16> to vector<16x32xf32>
      %c0_56 = arith.constant 0 : index
      %c0_57 = arith.constant 0 : index
      %173 = vector.load %arg9[%c0_56, %c0_57] : memref<16x32xf32, #tpu.memory_space<vmem>>, vector<16x32xf32>
      tpu.vector_store %arg9[%c0_56, %c0_57], %172 {strides = array<i32>} : memref<16x32xf32, #tpu.memory_space<vmem>>, vector<16x32xf32>,
    } else {
    }
    %c0 = arith.constant 0 : index
    %c0_1 = arith.constant 0 : index
    %3 = vector.load %arg9[%c0, %c0_1] : memref<16x32xf32, #tpu.memory_space<vmem>>, vector<16x32xf32>
    %c0_2 = arith.constant 0 : index
    %c0_3 = arith.constant 0 : index
    %c0_4 = arith.constant 0 : index
    %4 = vector.load %arg5[%c0_2, %c0_3, %c0_4] : memref<1x8x128xf32, #tpu.memory_space<vmem>>, vector<1x8x128xf32>
    %5 = vector.shape_cast %4 : vector<1x8x128xf32> to vector<8x128xf32>
    %6 = vector.extract_strided_slice %5 {offsets = [0, 0], sizes = [1, 32], strides = [1, 1]} : vector<8x128xf32> to vector<1x32xf32>
    %7 = vector.extract_strided_slice %5 {offsets = [1, 0], sizes = [1, 32], strides = [1, 1]} : vector<8x128xf32> to vector<1x32xf32>
    %8 = vector.extract_strided_slice %5 {offsets = [2, 0], sizes = [1, 32], strides = [1, 1]} : vector<8x128xf32> to vector<1x32xf32>
    %9 = vector.extract_strided_slice %5 {offsets = [3, 0], sizes = [1, 32], strides = [1, 1]} : vector<8x128xf32> to vector<1x32xf32>
    %10 = vector.extract_strided_slice %5 {offsets = [4, 0], sizes = [1, 32], strides = [1, 1]} : vector<8x128xf32> to vector<1x32xf32>
    %11 = vector.extract_strided_slice %5 {offsets = [5, 0], sizes = [1, 128], strides = [1, 1]} : vector<8x128xf32> to vector<1x128xf32>
    %12 = arith.truncf %3 : vector<16x32xf32> to vector<16x32xbf16>
    %c0_5 = arith.constant 0 : index
    %c0_6 = arith.constant 0 : index
    %c0_7 = arith.constant 0 : index
    %13 = vector.load %arg2[%c0_5, %c0_6, %c0_7] : memref<1x32x96xbf16, #tpu.memory_space<vmem>>, vector<1x32x96xbf16>
    %14 = vector.shape_cast %13 : vector<1x32x96xbf16> to vector<32x96xbf16>
    %cst = arith.constant dense<0.000000e+00> : vector<16x96xf32>
    %15 = tpu.matmul %12, %14, %cst {dimension_numbers = #tpu.dot_dimension_numbers<[1], [0], [0], [1], [0, 0, 1, 1], [], []>} : vector<16x32xbf16>, vector<32x96xbf16>, vector<16x96xf32> -> vector<16x96xf32>
    %16 = vector.shape_cast %15 : vector<16x96xf32> to vector<2x8x96xf32>
    %17 = tpu.iota {dimensions = array<i32: 0>} : vector<8x8xi32>
    %18 = tpu.iota {dimensions = array<i32: 1>} : vector<8x8xi32>
    %19 = arith.cmpi sle, %18, %17 : vector<8x8xi32>
    %20 = vector.shape_cast %19 : vector<8x8xi1> to vector<1x8x8xi1>
    %21 = vector.extract_strided_slice %16 {offsets = [0, 0, 0], sizes = [2, 8, 8], strides = [1, 1, 1]} : vector<2x8x96xf32> to vector<2x8x8xf32>
    %cst_8 = arith.constant 0.353553385 : f32
    %22 = vector.broadcast %cst_8 : f32 to vector<2x8x8xf32>
    %23 = arith.mulf %21, %22 : vector<2x8x8xf32>
    %24 = vector.extract_strided_slice %16 {offsets = [0, 0, 32], sizes = [2, 8, 8], strides = [1, 1, 1]} : vector<2x8x96xf32> to vector<2x8x8xf32>
    %25 = vector.extract_strided_slice %16 {offsets = [0, 0, 64], sizes = [2, 8, 8], strides = [1, 1, 1]} : vector<2x8x96xf32> to vector<2x8x8xf32>
    "tpu.trace_start"() <{level = 10 : i32, message = "btd,bsd->bts"}> : () -> ()
    %cst_9 = arith.constant dense<0.000000e+00> : vector<2x8x8xf32>
    %26 = tpu.matmul %23, %24, %cst_9 {dimension_numbers = #tpu.dot_dimension_numbers<[2], [2], [1], [1], [0, 0, 0, 1, 1, 1], [0], [0]>} : vector<2x8x8xf32>, vector<2x8x8xf32>, vector<2x8x8xf32> -> vector<2x8x8xf32>
    %cst_10 = arith.constant 0xFF800000 : f32
    "tpu.trace_stop"() : () -> ()
    %27 = vector.shape_cast %20 : vector<1x8x8xi1> to vector<1x8x8xi1>
    %28 = vector.broadcast %27 : vector<1x8x8xi1> to vector<2x8x8xi1>
    %29 = vector.broadcast %cst_10 : f32 to vector<2x8x8xf32>
    %30 = arith.select %28, %26, %29 : vector<2x8x8xi1>, vector<2x8x8xf32>
    %cst_11 = arith.constant dense<0xFF800000> : vector<2x8xf32>
    %31 = vector.multi_reduction <maximumf>, %30, %cst_11 [2] : vector<2x8x8xf32> to vector<2x8xf32>
    %32 = vector.shape_cast %31 : vector<2x8xf32> to vector<2x8x1xf32>
    %33 = vector.broadcast %32 : vector<2x8x1xf32> to vector<2x8x8xf32>
    %34 = arith.subf %30, %33 : vector<2x8x8xf32>
    %35 = math.exp %34 : vector<2x8x8xf32>
    %cst_12 = arith.constant dense<0.000000e+00> : vector<2x8xf32>
    %36 = vector.multi_reduction <add>, %35, %cst_12 [2] : vector<2x8x8xf32> to vector<2x8xf32>
    %37 = vector.shape_cast %36 : vector<2x8xf32> to vector<2x8x1xf32>
    %38 = tpu.reciprocal %37 {approx = true} : vector<2x8x1xf32> -> vector<2x8x1xf32>
    %39 = vector.broadcast %38 : vector<2x8x1xf32> to vector<2x8x8xf32>
    %40 = arith.mulf %35, %39 : vector<2x8x8xf32>
    "tpu.trace_start"() <{level = 10 : i32, message = "bts,bsd->btd"}> : () -> ()
    %cst_13 = arith.constant dense<0.000000e+00> : vector<2x8x8xf32>
    %41 = tpu.matmul %40, %25, %cst_13 {dimension_numbers = #tpu.dot_dimension_numbers<[2], [1], [1], [2], [0, 0, 0, 1, 1, 2], [0], [0]>} : vector<2x8x8xf32>, vector<2x8x8xf32>, vector<2x8x8xf32> -> vector<2x8x8xf32>
    "tpu.trace_stop"() : () -> ()
    %42 = vector.extract_strided_slice %16 {offsets = [0, 0, 8], sizes = [2, 8, 8], strides = [1, 1, 1]} : vector<2x8x96xf32> to vector<2x8x8xf32>
    %cst_14 = arith.constant 0.353553385 : f32
    %43 = vector.broadcast %cst_14 : f32 to vector<2x8x8xf32>
    %44 = arith.mulf %42, %43 : vector<2x8x8xf32>
    %45 = vector.extract_strided_slice %16 {offsets = [0, 0, 40], sizes = [2, 8, 8], strides = [1, 1, 1]} : vector<2x8x96xf32> to vector<2x8x8xf32>
    %46 = vector.extract_strided_slice %16 {offsets = [0, 0, 72], sizes = [2, 8, 8], strides = [1, 1, 1]} : vector<2x8x96xf32> to vector<2x8x8xf32>
    "tpu.trace_start"() <{level = 10 : i32, message = "btd,bsd->bts"}> : () -> ()
    %cst_15 = arith.constant dense<0.000000e+00> : vector<2x8x8xf32>
    %47 = tpu.matmul %44, %45, %cst_15 {dimension_numbers = #tpu.dot_dimension_numbers<[2], [2], [1], [1], [0, 0, 0, 1, 1, 1], [0], [0]>} : vector<2x8x8xf32>, vector<2x8x8xf32>, vector<2x8x8xf32> -> vector<2x8x8xf32>
    %cst_16 = arith.constant 0xFF800000 : f32
    "tpu.trace_stop"() : () -> ()
    %48 = vector.shape_cast %20 : vector<1x8x8xi1> to vector<1x8x8xi1>
    %49 = vector.broadcast %48 : vector<1x8x8xi1> to vector<2x8x8xi1>
    %50 = vector.broadcast %cst_16 : f32 to vector<2x8x8xf32>
    %51 = arith.select %49, %47, %50 : vector<2x8x8xi1>, vector<2x8x8xf32>
    %cst_17 = arith.constant dense<0xFF800000> : vector<2x8xf32>
    %52 = vector.multi_reduction <maximumf>, %51, %cst_17 [2] : vector<2x8x8xf32> to vector<2x8xf32>
    %53 = vector.shape_cast %52 : vector<2x8xf32> to vector<2x8x1xf32>
    %54 = vector.broadcast %53 : vector<2x8x1xf32> to vector<2x8x8xf32>
    %55 = arith.subf %51, %54 : vector<2x8x8xf32>
    %56 = math.exp %55 : vector<2x8x8xf32>
    %cst_18 = arith.constant dense<0.000000e+00> : vector<2x8xf32>
    %57 = vector.multi_reduction <add>, %56, %cst_18 [2] : vector<2x8x8xf32> to vector<2x8xf32>
    %58 = vector.shape_cast %57 : vector<2x8xf32> to vector<2x8x1xf32>
    %59 = tpu.reciprocal %58 {approx = true} : vector<2x8x1xf32> -> vector<2x8x1xf32>
    %60 = vector.broadcast %59 : vector<2x8x1xf32> to vector<2x8x8xf32>
    %61 = arith.mulf %56, %60 : vector<2x8x8xf32>
    "tpu.trace_start"() <{level = 10 : i32, message = "bts,bsd->btd"}> : () -> ()
    %cst_19 = arith.constant dense<0.000000e+00> : vector<2x8x8xf32>
    %62 = tpu.matmul %61, %46, %cst_19 {dimension_numbers = #tpu.dot_dimension_numbers<[2], [1], [1], [2], [0, 0, 0, 1, 1, 2], [0], [0]>} : vector<2x8x8xf32>, vector<2x8x8xf32>, vector<2x8x8xf32> -> vector<2x8x8xf32>
    "tpu.trace_stop"() : () -> ()
    %63 = vector.extract_strided_slice %16 {offsets = [0, 0, 16], sizes = [2, 8, 8], strides = [1, 1, 1]} : vector<2x8x96xf32> to vector<2x8x8xf32>
    %cst_20 = arith.constant 0.353553385 : f32
    %64 = vector.broadcast %cst_20 : f32 to vector<2x8x8xf32>
    %65 = arith.mulf %63, %64 : vector<2x8x8xf32>
    %66 = vector.extract_strided_slice %16 {offsets = [0, 0, 48], sizes = [2, 8, 8], strides = [1, 1, 1]} : vector<2x8x96xf32> to vector<2x8x8xf32>
    %67 = vector.extract_strided_slice %16 {offsets = [0, 0, 80], sizes = [2, 8, 8], strides = [1, 1, 1]} : vector<2x8x96xf32> to vector<2x8x8xf32>
    "tpu.trace_start"() <{level = 10 : i32, message = "btd,bsd->bts"}> : () -> ()
    %cst_21 = arith.constant dense<0.000000e+00> : vector<2x8x8xf32>
    %68 = tpu.matmul %65, %66, %cst_21 {dimension_numbers = #tpu.dot_dimension_numbers<[2], [2], [1], [1], [0, 0, 0, 1, 1, 1], [0], [0]>} : vector<2x8x8xf32>, vector<2x8x8xf32>, vector<2x8x8xf32> -> vector<2x8x8xf32>
    %cst_22 = arith.constant 0xFF800000 : f32
    "tpu.trace_stop"() : () -> ()
    %69 = vector.shape_cast %20 : vector<1x8x8xi1> to vector<1x8x8xi1>
    %70 = vector.broadcast %69 : vector<1x8x8xi1> to vector<2x8x8xi1>
    %71 = vector.broadcast %cst_22 : f32 to vector<2x8x8xf32>
    %72 = arith.select %70, %68, %71 : vector<2x8x8xi1>, vector<2x8x8xf32>
    %cst_23 = arith.constant dense<0xFF800000> : vector<2x8xf32>
    %73 = vector.multi_reduction <maximumf>, %72, %cst_23 [2] : vector<2x8x8xf32> to vector<2x8xf32>
    %74 = vector.shape_cast %73 : vector<2x8xf32> to vector<2x8x1xf32>
    %75 = vector.broadcast %74 : vector<2x8x1xf32> to vector<2x8x8xf32>
    %76 = arith.subf %72, %75 : vector<2x8x8xf32>
    %77 = math.exp %76 : vector<2x8x8xf32>
    %cst_24 = arith.constant dense<0.000000e+00> : vector<2x8xf32>
    %78 = vector.multi_reduction <add>, %77, %cst_24 [2] : vector<2x8x8xf32> to vector<2x8xf32>
    %79 = vector.shape_cast %78 : vector<2x8xf32> to vector<2x8x1xf32>
    %80 = tpu.reciprocal %79 {approx = true} : vector<2x8x1xf32> -> vector<2x8x1xf32>
    %81 = vector.broadcast %80 : vector<2x8x1xf32> to vector<2x8x8xf32>
    %82 = arith.mulf %77, %81 : vector<2x8x8xf32>
    "tpu.trace_start"() <{level = 10 : i32, message = "bts,bsd->btd"}> : () -> ()
    %cst_25 = arith.constant dense<0.000000e+00> : vector<2x8x8xf32>
    %83 = tpu.matmul %82, %67, %cst_25 {dimension_numbers = #tpu.dot_dimension_numbers<[2], [1], [1], [2], [0, 0, 0, 1, 1, 2], [0], [0]>} : vector<2x8x8xf32>, vector<2x8x8xf32>, vector<2x8x8xf32> -> vector<2x8x8xf32>
    "tpu.trace_stop"() : () -> ()
    %84 = vector.extract_strided_slice %16 {offsets = [0, 0, 24], sizes = [2, 8, 8], strides = [1, 1, 1]} : vector<2x8x96xf32> to vector<2x8x8xf32>
    %cst_26 = arith.constant 0.353553385 : f32
    %85 = vector.broadcast %cst_26 : f32 to vector<2x8x8xf32>
    %86 = arith.mulf %84, %85 : vector<2x8x8xf32>
    %87 = vector.extract_strided_slice %16 {offsets = [0, 0, 56], sizes = [2, 8, 8], strides = [1, 1, 1]} : vector<2x8x96xf32> to vector<2x8x8xf32>
    %88 = vector.extract_strided_slice %16 {offsets = [0, 0, 88], sizes = [2, 8, 8], strides = [1, 1, 1]} : vector<2x8x96xf32> to vector<2x8x8xf32>
    "tpu.trace_start"() <{level = 10 : i32, message = "btd,bsd->bts"}> : () -> ()
    %cst_27 = arith.constant dense<0.000000e+00> : vector<2x8x8xf32>
    %89 = tpu.matmul %86, %87, %cst_27 {dimension_numbers = #tpu.dot_dimension_numbers<[2], [2], [1], [1], [0, 0, 0, 1, 1, 1], [0], [0]>} : vector<2x8x8xf32>, vector<2x8x8xf32>, vector<2x8x8xf32> -> vector<2x8x8xf32>
    %cst_28 = arith.constant 0xFF800000 : f32
    "tpu.trace_stop"() : () -> ()
    %90 = vector.shape_cast %20 : vector<1x8x8xi1> to vector<1x8x8xi1>
    %91 = vector.broadcast %90 : vector<1x8x8xi1> to vector<2x8x8xi1>
    %92 = vector.broadcast %cst_28 : f32 to vector<2x8x8xf32>
    %93 = arith.select %91, %89, %92 : vector<2x8x8xi1>, vector<2x8x8xf32>
    %cst_29 = arith.constant dense<0xFF800000> : vector<2x8xf32>
    %94 = vector.multi_reduction <maximumf>, %93, %cst_29 [2] : vector<2x8x8xf32> to vector<2x8xf32>
    %95 = vector.shape_cast %94 : vector<2x8xf32> to vector<2x8x1xf32>
    %96 = vector.broadcast %95 : vector<2x8x1xf32> to vector<2x8x8xf32>
    %97 = arith.subf %93, %96 : vector<2x8x8xf32>
    %98 = math.exp %97 : vector<2x8x8xf32>
    %cst_30 = arith.constant dense<0.000000e+00> : vector<2x8xf32>
    %99 = vector.multi_reduction <add>, %98, %cst_30 [2] : vector<2x8x8xf32> to vector<2x8xf32>
    %100 = vector.shape_cast %99 : vector<2x8xf32> to vector<2x8x1xf32>
    %101 = tpu.reciprocal %100 {approx = true} : vector<2x8x1xf32> -> vector<2x8x1xf32>
    %102 = vector.broadcast %101 : vector<2x8x1xf32> to vector<2x8x8xf32>
    %103 = arith.mulf %98, %102 : vector<2x8x8xf32>
    "tpu.trace_start"() <{level = 10 : i32, message = "bts,bsd->btd"}> : () -> ()
    %cst_31 = arith.constant dense<0.000000e+00> : vector<2x8x8xf32>
    %104 = tpu.matmul %103, %88, %cst_31 {dimension_numbers = #tpu.dot_dimension_numbers<[2], [1], [1], [2], [0, 0, 0, 1, 1, 2], [0], [0]>} : vector<2x8x8xf32>, vector<2x8x8xf32>, vector<2x8x8xf32> -> vector<2x8x8xf32>
    "tpu.trace_stop"() : () -> ()
    %105 = tpu.concatenate %41, %62, %83, %104 in 2 : vector<2x8x8xf32>, vector<2x8x8xf32>, vector<2x8x8xf32>, vector<2x8x8xf32> -> vector<2x8x32xf32>
    %106 = vector.shape_cast %105 : vector<2x8x32xf32> to vector<16x32xf32>
    %107 = arith.addf %3, %106 : vector<16x32xf32>
    %cst_32 = arith.constant dense<0.000000e+00> : vector<16xf32>
    %108 = vector.multi_reduction <add>, %107, %cst_32 [1] : vector<16x32xf32> to vector<16xf32>
    %109 = vector.shape_cast %108 : vector<16xf32> to vector<16x1xf32>
    %cst_33 = arith.constant 3.200000e+01 : f32
    %110 = vector.broadcast %cst_33 : f32 to vector<16x1xf32>
    %111 = arith.divf %109, %110 : vector<16x1xf32>
    %112 = vector.broadcast %111 : vector<16x1xf32> to vector<16x32xf32>
    %113 = arith.subf %107, %112 : vector<16x32xf32>
    %114 = arith.mulf %113, %113 : vector<16x32xf32>
    %cst_34 = arith.constant dense<0.000000e+00> : vector<16xf32>
    %115 = vector.multi_reduction <add>, %114, %cst_34 [1] : vector<16x32xf32> to vector<16xf32>
    %116 = vector.shape_cast %115 : vector<16xf32> to vector<16x1xf32>
    %cst_35 = arith.constant 3.200000e+01 : f32
    %117 = vector.broadcast %cst_35 : f32 to vector<16x1xf32>
    %118 = arith.divf %116, %117 : vector<16x1xf32>
    %119 = vector.broadcast %111 : vector<16x1xf32> to vector<16x32xf32>
    %120 = arith.subf %107, %119 : vector<16x32xf32>
    %cst_36 = arith.constant 9.99999974E-6 : f32
    %121 = vector.broadcast %cst_36 : f32 to vector<16x1xf32>
    %122 = arith.addf %118, %121 : vector<16x1xf32>
    %123 = math.rsqrt %122 : vector<16x1xf32>
    %124 = vector.broadcast %123 : vector<16x1xf32> to vector<16x32xf32>
    %125 = arith.mulf %120, %124 : vector<16x32xf32>
    %126 = vector.broadcast %6 : vector<1x32xf32> to vector<16x32xf32>
    %127 = arith.mulf %125, %126 : vector<16x32xf32>
    %128 = vector.broadcast %7 : vector<1x32xf32> to vector<16x32xf32>
    %129 = arith.addf %127, %128 : vector<16x32xf32>
    %130 = arith.truncf %129 : vector<16x32xf32> to vector<16x32xbf16>
    %c0_37 = arith.constant 0 : index
    %c0_38 = arith.constant 0 : index
    %c0_39 = arith.constant 0 : index
    %131 = vector.load %arg3[%c0_37, %c0_38, %c0_39] : memref<1x32x128xbf16, #tpu.memory_space<vmem>>, vector<1x32x128xbf16>
    %132 = vector.shape_cast %131 : vector<1x32x128xbf16> to vector<32x128xbf16>
    %cst_40 = arith.constant dense<0.000000e+00> : vector<16x128xf32>
    %133 = tpu.matmul %130, %132, %cst_40 {dimension_numbers = #tpu.dot_dimension_numbers<[1], [0], [0], [1], [0, 0, 1, 1], [], []>} : vector<16x32xbf16>, vector<32x128xbf16>, vector<16x128xf32> -> vector<16x128xf32>
    %134 = vector.broadcast %11 : vector<1x128xf32> to vector<16x128xf32>
    %135 = arith.addf %133, %134 : vector<16x128xf32>
    %cst_41 = arith.constant 0.000000e+00 : f32
    %136 = vector.broadcast %cst_41 : f32 to vector<16x128xf32>
    %137 = arith.maximumf %135, %136 : vector<16x128xf32>
    %138 = arith.truncf %137 : vector<16x128xf32> to vector<16x128xbf16>
    %c0_42 = arith.constant 0 : index
    %c0_43 = arith.constant 0 : index
    %c0_44 = arith.constant 0 : index
    %139 = vector.load %arg4[%c0_42, %c0_43, %c0_44] : memref<1x128x32xbf16, #tpu.memory_space<vmem>>, vector<1x128x32xbf16>
    %140 = vector.shape_cast %139 : vector<1x128x32xbf16> to vector<128x32xbf16>
    %cst_45 = arith.constant dense<0.000000e+00> : vector<16x32xf32>
    %141 = tpu.matmul %138, %140, %cst_45 {dimension_numbers = #tpu.dot_dimension_numbers<[1], [0], [0], [1], [0, 0, 1, 1], [], []>} : vector<16x128xbf16>, vector<128x32xbf16>, vector<16x32xf32> -> vector<16x32xf32>
    %142 = vector.broadcast %10 : vector<1x32xf32> to vector<16x32xf32>
    %143 = arith.addf %141, %142 : vector<16x32xf32>
    %144 = arith.addf %129, %143 : vector<16x32xf32>
    %cst_46 = arith.constant dense<0.000000e+00> : vector<16xf32>
    %145 = vector.multi_reduction <add>, %144, %cst_46 [1] : vector<16x32xf32> to vector<16xf32>
    %146 = vector.shape_cast %145 : vector<16xf32> to vector<16x1xf32>
    %cst_47 = arith.constant 3.200000e+01 : f32
    %147 = vector.broadcast %cst_47 : f32 to vector<16x1xf32>
    %148 = arith.divf %146, %147 : vector<16x1xf32>
    %149 = vector.broadcast %148 : vector<16x1xf32> to vector<16x32xf32>
    %150 = arith.subf %144, %149 : vector<16x32xf32>
    %151 = arith.mulf %150, %150 : vector<16x32xf32>
    %cst_48 = arith.constant dense<0.000000e+00> : vector<16xf32>
    %152 = vector.multi_reduction <add>, %151, %cst_48 [1] : vector<16x32xf32> to vector<16xf32>
    %153 = vector.shape_cast %152 : vector<16xf32> to vector<16x1xf32>
    %cst_49 = arith.constant 3.200000e+01 : f32
    %154 = vector.broadcast %cst_49 : f32 to vector<16x1xf32>
    %155 = arith.divf %153, %154 : vector<16x1xf32>
    %156 = vector.broadcast %148 : vector<16x1xf32> to vector<16x32xf32>
    %157 = arith.subf %144, %156 : vector<16x32xf32>
    %cst_50 = arith.constant 9.99999974E-6 : f32
    %158 = vector.broadcast %cst_50 : f32 to vector<16x1xf32>
    %159 = arith.addf %155, %158 : vector<16x1xf32>
    %160 = math.rsqrt %159 : vector<16x1xf32>
    %161 = vector.broadcast %160 : vector<16x1xf32> to vector<16x32xf32>
    %162 = arith.mulf %157, %161 : vector<16x32xf32>
    %163 = vector.broadcast %8 : vector<1x32xf32> to vector<16x32xf32>
    %164 = arith.mulf %162, %163 : vector<16x32xf32>
    %165 = vector.broadcast %9 : vector<1x32xf32> to vector<16x32xf32>
    %166 = arith.addf %164, %165 : vector<16x32xf32>
    %c0_51 = arith.constant 0 : index
    %c0_52 = arith.constant 0 : index
    %167 = vector.load %arg9[%c0_51, %c0_52] : memref<16x32xf32, #tpu.memory_space<vmem>>, vector<16x32xf32>
    tpu.vector_store %arg9[%c0_51, %c0_52], %166 {strides = array<i32>} : memref<16x32xf32, #tpu.memory_space<vmem>>, vector<16x32xf32>,
    %c1_i32 = arith.constant 1 : i32
    %168 = arith.cmpi eq, %arg0, %c1_i32 : i32
    %169 = arith.extui %168 : i1 to i32
    %c0_i32_53 = arith.constant 0 : i32
    %170 = arith.cmpi ne, %169, %c0_i32_53 : i32
    scf.if %170 {
      %171 = arith.truncf %166 : vector<16x32xf32> to vector<16x32xbf16>
      %c0_54 = arith.constant 0 : index
      %c0_55 = arith.constant 0 : index
      %172 = vector.load %arg6[%c0_54, %c0_55] : memref<32x128xbf16, #tpu.memory_space<vmem>>, vector<32x128xbf16>
      %cst_56 = arith.constant dense<0.000000e+00> : vector<16x128xf32>
      %173 = tpu.matmul %171, %172, %cst_56 {dimension_numbers = #tpu.dot_dimension_numbers<[1], [0], [0], [1], [0, 0, 1, 1], [], []>} : vector<16x32xbf16>, vector<32x128xbf16>, vector<16x128xf32> -> vector<16x128xf32>
      %c0_57 = arith.constant 0 : index
      %c0_58 = arith.constant 0 : index
      %174 = vector.load %arg7[%c0_57, %c0_58] : memref<1x128xf32, #tpu.memory_space<vmem>>, vector<1x128xf32>
      %175 = vector.broadcast %174 : vector<1x128xf32> to vector<16x128xf32>
      %176 = arith.addf %173, %175 : vector<16x128xf32>
      %c0_59 = arith.constant 0 : index
      %c0_60 = arith.constant 0 : index
      %177 = vector.load %arg8[%c0_59, %c0_60] : memref<16x128xf32, #tpu.memory_space<vmem>>, vector<16x128xf32>
      tpu.vector_store %arg8[%c0_59, %c0_60], %176 {strides = array<i32>} : memref<16x128xf32, #tpu.memory_space<vmem>>, vector<16x128xf32>,
    } else {
    }
    return
  }
  func.func @transform_0(%arg0: i32) -> (i32, i32) {
    %c0_i32 = arith.constant 0 : i32
    %c0_i32_0 = arith.constant 0 : i32
    %c0_i32_1 = arith.constant 0 : i32
    return %c0_i32, %c0_i32_0 : i32, i32
  }
  func.func @transform_1(%arg0: i32) -> (i32, i32, i32) {
    %c0_i32 = arith.constant 0 : i32
    %c0_i32_0 = arith.constant 0 : i32
    %c0_i32_1 = arith.constant 0 : i32
    return %arg0, %c0_i32, %c0_i32_0 : i32, i32, i32
  }
  func.func @transform_2(%arg0: i32) -> (i32, i32, i32) {
    %c0_i32 = arith.constant 0 : i32
    %c0_i32_0 = arith.constant 0 : i32
    %c0_i32_1 = arith.constant 0 : i32
    return %arg0, %c0_i32, %c0_i32_0 : i32, i32, i32
  }
  func.func @transform_3(%arg0: i32) -> (i32, i32, i32) {
    %c0_i32 = arith.constant 0 : i32
    %c0_i32_0 = arith.constant 0 : i32
    %c0_i32_1 = arith.constant 0 : i32
    return %arg0, %c0_i32, %c0_i32_0 : i32, i32, i32
  }
  func.func @transform_4(%arg0: i32) -> (i32, i32, i32) {
    %c0_i32 = arith.constant 0 : i32
    %c0_i32_0 = arith.constant 0 : i32
    %c0_i32_1 = arith.constant 0 : i32
    return %arg0, %c0_i32, %c0_i32_0 : i32, i32, i32
  }
  func.func @transform_5(%arg0: i32) -> (i32, i32) {
    %c0_i32 = arith.constant 0 : i32
    %c0_i32_0 = arith.constant 0 : i32
    %c0_i32_1 = arith.constant 0 : i32
    return %c0_i32, %c0_i32_0 : i32, i32
  }
  func.func @transform_6(%arg0: i32) -> (i32, i32) {
    %c0_i32 = arith.constant 0 : i32
    %c0_i32_0 = arith.constant 0 : i32
    %c0_i32_1 = arith.constant 0 : i32
    return %c0_i32, %c0_i32_0 : i32, i32
  }
  func.func @transform_7(%arg0: i32) -> (i32, i32) {
    %c0_i32 = arith.constant 0 : i32
    %c0_i32_0 = arith.constant 0 : i32
    %c0_i32_1 = arith.constant 0 : i32
    return %c0_i32, %c0_i32_0 : i32, i32
  }
}

</mosaic_0001>

<llo_original>
// kernel: tpu_custom_call.1
$region0: #{tpu_custom_call.1}
  #allocation0 [shape = 'u32[]', space=smem, size = 0x4, offset = 0x4, fixed_abs, tag = 'smem constant byte address 0x4 - core index']
  #allocation1 [shape = 'u32[144,128]{1,0:T(1,128)}', space=vmem, size = 0x12000, scoped, tag = 'internal scratch']
  #allocation2 [shape = 'f32[16,32]{1,0:T(8,128)}', space=vmem, size = 0x2000, scoped, tag = 'scratch operand']
  %s0 = inlined_call_operand.vmem [shape: bf16[16,32], index: 0, kind: input, shape index: {}]
  %s1 = inlined_call_operand.vmem [shape: bf16[2,32,96], index: 1, kind: input, shape index: {}]
  %s2 = inlined_call_operand.vmem [shape: bf16[2,32,128], index: 2, kind: input, shape index: {}]
  %s3 = inlined_call_operand.vmem [shape: bf16[2,128,32], index: 3, kind: input, shape index: {}]
  %s4 = inlined_call_operand.vmem [shape: f32[2,8,128], index: 4, kind: input, shape index: {}]
  %s5 = inlined_call_operand.vmem [shape: bf16[32,128], index: 5, kind: input, shape index: {}]
  %s6 = inlined_call_operand.vmem [shape: f32[1,128], index: 6, kind: input, shape index: {}]
  %s7 = inlined_call_operand.hbm [shape: f32[16,128], index: 7, kind: output, shape index: {}]
  %s8 = sld [smem:[#allocation0]]
  $region69: #{tpu_custom_call.1} parent=0
    _
  %s10 = ssub.s32 1, %s8
  %s11 = scalar_select 0, %s10, %s8
  $region1: #{tpu_custom_call.1} parent=0
    #allocation3 [shape = 'u8[8192]{0}', space=vmem, size = 0x2000, scoped, tag = 'output window, operand 0, single buffered']
    #allocation4 [shape = 's32[2]{0}', space=sflag, size = 0x8, scoped, tag = 'scoped memory for tpu_custom_call.1']
    %12 = vsyncpa [#allocation4], 0
    loop: start=0, step=1, limit=4
    $region2: #{tpu_custom_call.1} parent=1 // loop_pre_header
      _
    $region3: #{tpu_custom_call.1} parent=1 // loop_header
      %s14 = sphi 0, %s18
      %p15 = scmp.ge.s32.totalorder %s14, 4
      %s22 = sphi 0, %s22
      %s24 = sphi 0, %s22
      %s25 = sphi 0, %s24
      %s39 = sphi 0, %s25
      %s45 = sphi 0, %s47
      %s48 = sphi 0, %s45
      %s49 = sphi 0, %s48
      %s65 = sphi 0, %s49
      %s71 = sphi 0, %s73
      %s74 = sphi 0, %s71
      %s75 = sphi 0, %s74
      %s91 = sphi 0, %s75
      %s97 = sphi 0, %s99
      %s100 = sphi 0, %s97
      %s101 = sphi 0, %s100
      %s117 = sphi 0, %s101
      %s123 = sphi 0, %s125
      %s126 = sphi 0, %s123
      %s127 = sphi 0, %s126
      %s143 = sphi 0, %s127
      %s147 = sphi 0, %s147
      %s149 = sphi 0, %s147
      %s150 = sphi 0, %s149
      %s164 = sphi 0, %s150
      %s168 = sphi 0, %s168
      %s170 = sphi 0, %s168
      %s171 = sphi 0, %s170
      %s185 = sphi 0, %s171
      %s189 = sphi 0, %s189
      %s191 = sphi 0, %s189
      %s192 = sphi 0, %s191
      %s206 = sphi 0, %s192
    $region4: #{tpu_custom_call.1} parent=1 // loop_header_branch
      %17 = sbr.rel (%p15) target = $region8
    $region5: #{tpu_custom_call.1} parent=1 // loop_body
      %s19 = ssub.s32 %s14, 1
      %s20 = ssub.s32 %s14, 2
      %s21 = sadd.s32 %s14, 1
      %s23 = sadd.s32 %s22, 1
      %p26 = scmp.eq.s32.totalorder %s14, 1
      %p27 = scmp.ne.s32.totalorder %s22, %s24
      %p28 = scmp.eq.s32.totalorder %s14, 0
      %p29 = por %p27, %p28
      %p30 = scmp.ne.s32.totalorder %s22, %s24
      %p31 = scmp.eq.s32.totalorder %s19, 1
      %p32 = por %p30, %p31
      %p33 = scmp.ne.s32.totalorder %s24, %s25
      %p34 = scmp.eq.s32.totalorder %s19, 0
      %p35 = por %p33, %p34
      %p36 = scmp.ne.s32.totalorder %s24, %s25
      %p37 = scmp.eq.s32.totalorder %s20, 1
      %p38 = por %p36, %p37
      %p40 = scmp.ne.s32.totalorder %s25, %s39
      %p41 = scmp.eq.s32.totalorder %s20, 0
      %p42 = por %p40, %p41
      %s43 = ssub.s32 %s14, %s21
      %p44 = scmp.eq.s32.totalorder %s43, 0
      %s46 = sadd.s32 %s45, 1
      %s47 = scalar_select %p44, %s45, %s46
      %p50 = pneg %p44
      %p51 = scmp.eq.s32.totalorder %s14, 1
      %p52 = por %p50, %p51
      %p53 = scmp.ne.s32.totalorder %s45, %s48
      %p54 = scmp.eq.s32.totalorder %s14, 0
      %p55 = por %p53, %p54
      %p56 = scmp.ne.s32.totalorder %s45, %s48
      %p57 = scmp.eq.s32.totalorder %s19, 1
      %p58 = por %p56, %p57
      %p59 = scmp.ne.s32.totalorder %s48, %s49
      %p60 = scmp.eq.s32.totalorder %s19, 0
      %p61 = por %p59, %p60
      %p62 = scmp.ne.s32.totalorder %s48, %s49
      %p63 = scmp.eq.s32.totalorder %s20, 1
      %p64 = por %p62, %p63
      %p66 = scmp.ne.s32.totalorder %s49, %s65
      %p67 = scmp.eq.s32.totalorder %s20, 0
      %p68 = por %p66, %p67
      %s69 = ssub.s32 %s14, %s21
      %p70 = scmp.eq.s32.totalorder %s69, 0
      %s72 = sadd.s32 %s71, 1
      %s73 = scalar_select %p70, %s71, %s72
      %p76 = pneg %p70
      %p77 = scmp.eq.s32.totalorder %s14, 1
      %p78 = por %p76, %p77
      %p79 = scmp.ne.s32.totalorder %s71, %s74
      %p80 = scmp.eq.s32.totalorder %s14, 0
      %p81 = por %p79, %p80
      %p82 = scmp.ne.s32.totalorder %s71, %s74
      %p83 = scmp.eq.s32.totalorder %s19, 1
      %p84 = por %p82, %p83
      %p85 = scmp.ne.s32.totalorder %s74, %s75
      %p86 = scmp.eq.s32.totalorder %s19, 0
      %p87 = por %p85, %p86
      %p88 = scmp.ne.s32.totalorder %s74, %s75
      %p89 = scmp.eq.s32.totalorder %s20, 1
      %p90 = por %p88, %p89
      %p92 = scmp.ne.s32.totalorder %s75, %s91
      %p93 = scmp.eq.s32.totalorder %s20, 0
      %p94 = por %p92, %p93
      %s95 = ssub.s32 %s14, %s21
      %p96 = scmp.eq.s32.totalorder %s95, 0
      %s98 = sadd.s32 %s97, 1
      %s99 = scalar_select %p96, %s97, %s98
      %p102 = pneg %p96
      %p103 = scmp.eq.s32.totalorder %s14, 1
      %p104 = por %p102, %p103
      %p105 = scmp.ne.s32.totalorder %s97, %s100
      %p106 = scmp.eq.s32.totalorder %s14, 0
      %p107 = por %p105, %p106
      %p108 = scmp.ne.s32.totalorder %s97, %s100
      %p109 = scmp.eq.s32.totalorder %s19, 1
      %p110 = por %p108, %p109
      %p111 = scmp.ne.s32.totalorder %s100, %s101
      %p112 = scmp.eq.s32.totalorder %s19, 0
      %p113 = por %p111, %p112
      %p114 = scmp.ne.s32.totalorder %s100, %s101
      %p115 = scmp.eq.s32.totalorder %s20, 1
      %p116 = por %p114, %p115
      %p118 = scmp.ne.s32.totalorder %s101, %s117
      %p119 = scmp.eq.s32.totalorder %s20, 0
      %p120 = por %p118, %p119
      %s121 = ssub.s32 %s14, %s21
      %p122 = scmp.eq.s32.totalorder %s121, 0
      %s124 = sadd.s32 %s123, 1
      %s125 = scalar_select %p122, %s123, %s124
      %p128 = pneg %p122
      %p129 = scmp.eq.s32.totalorder %s14, 1
      %p130 = por %p128, %p129
      %p131 = scmp.ne.s32.totalorder %s123, %s126
      %p132 = scmp.eq.s32.totalorder %s14, 0
      %p133 = por %p131, %p132
      %p134 = scmp.ne.s32.totalorder %s123, %s126
      %p135 = scmp.eq.s32.totalorder %s19, 1
      %p136 = por %p134, %p135
      %p137 = scmp.ne.s32.totalorder %s126, %s127
      %p138 = scmp.eq.s32.totalorder %s19, 0
      %p139 = por %p137, %p138
      %p140 = scmp.ne.s32.totalorder %s126, %s127
      %p141 = scmp.eq.s32.totalorder %s20, 1
      %p142 = por %p140, %p141
      %p144 = scmp.ne.s32.totalorder %s127, %s143
      %p145 = scmp.eq.s32.totalorder %s20, 0
      %p146 = por %p144, %p145
      %s148 = sadd.s32 %s147, 1
      %p151 = scmp.eq.s32.totalorder %s14, 1
      %p152 = scmp.ne.s32.totalorder %s147, %s149
      %p153 = scmp.eq.s32.totalorder %s14, 0
      %p154 = por %p152, %p153
      %p155 = scmp.ne.s32.totalorder %s147, %s149
      %p156 = scmp.eq.s32.totalorder %s19, 1
      %p157 = por %p155, %p156
      %p158 = scmp.ne.s32.totalorder %s149, %s150
      %p159 = scmp.eq.s32.totalorder %s19, 0
      %p160 = por %p158, %p159
      %p161 = scmp.ne.s32.totalorder %s149, %s150
      %p162 = scmp.eq.s32.totalorder %s20, 1
      %p163 = por %p161, %p162
      %p165 = scmp.ne.s32.totalorder %s150, %s164
      %p166 = scmp.eq.s32.totalorder %s20, 0
      %p167 = por %p165, %p166
      %s169 = sadd.s32 %s168, 1
      %p172 = scmp.eq.s32.totalorder %s14, 1
      %p173 = scmp.ne.s32.totalorder %s168, %s170
      %p174 = scmp.eq.s32.totalorder %s14, 0
      %p175 = por %p173, %p174
      %p176 = scmp.ne.s32.totalorder %s168, %s170
      %p177 = scmp.eq.s32.totalorder %s19, 1
      %p178 = por %p176, %p177
      %p179 = scmp.ne.s32.totalorder %s170, %s171
      %p180 = scmp.eq.s32.totalorder %s19, 0
      %p181 = por %p179, %p180
      %p182 = scmp.ne.s32.totalorder %s170, %s171
      %p183 = scmp.eq.s32.totalorder %s20, 1
      %p184 = por %p182, %p183
      %p186 = scmp.ne.s32.totalorder %s171, %s185
      %p187 = scmp.eq.s32.totalorder %s20, 0
      %p188 = por %p186, %p187
      %s190 = sadd.s32 %s189, 1
      %p193 = scmp.eq.s32.totalorder %s14, 1
      %p194 = scmp.ne.s32.totalorder %s189, %s191
      %p195 = scmp.eq.s32.totalorder %s14, 0
      %p196 = por %p194, %p195
      %p197 = scmp.ne.s32.totalorder %s189, %s191
      %p198 = scmp.eq.s32.totalorder %s19, 1
      %p199 = por %p197, %p198
      %p200 = scmp.ne.s32.totalorder %s191, %s192
      %p201 = scmp.eq.s32.totalorder %s19, 0
      %p202 = por %p200, %p201
      %p203 = scmp.ne.s32.totalorder %s191, %s192
      %p204 = scmp.eq.s32.totalorder %s20, 1
      %p205 = por %p203, %p204
      %p207 = scmp.ne.s32.totalorder %s192, %s206
      %p208 = scmp.eq.s32.totalorder %s20, 0
      %p209 = por %p207, %p208
      %p210 = scmp.le.s32.totalorder 1, %s14
      %p211 = scmp.lt.s32.totalorder %s14, 3
      %p212 = pnand %p210, %p211
      %p213 = pneg %p212
      // Predicated region
      $region9: #{tpu_custom_call.1} parent=5 // pred_check
        _
      $region10: #{tpu_custom_call.1} parent=5 // pred_check_branch
        %215 = sbr.rel (%p212) target = $region12
      $region11: #{tpu_custom_call.1} parent=5 // pred_region
        %s216 = ssub.s32 %s14, 1
        // Predicated region
        $region13: #{tpu_custom_call.1} parent=11 // pred_check
          %p217 = pneg %p35
        $region14: #{tpu_custom_call.1} parent=11 // pred_check_branch
          %219 = sbr.rel (%p217) target = $region16
        $region15: #{tpu_custom_call.1} parent=11 // pred_region
          _
        $region16: #{tpu_custom_call.1} parent=11 // pred_fallthru
          _
        // Predicated region
        $region17: #{tpu_custom_call.1} parent=11 // pred_check
          %p220 = pneg %p160
        $region18: #{tpu_custom_call.1} parent=11 // pred_check_branch
          %222 = sbr.rel (%p220) target = $region20
        $region19: #{tpu_custom_call.1} parent=11 // pred_region
          _
        $region20: #{tpu_custom_call.1} parent=11 // pred_fallthru
          _
        // Predicated region
        $region21: #{tpu_custom_call.1} parent=11 // pred_check
          %p223 = pneg %p181
        $region22: #{tpu_custom_call.1} parent=11 // pred_check_branch
          %225 = sbr.rel (%p223) target = $region24
        $region23: #{tpu_custom_call.1} parent=11 // pred_region
          _
        $region24: #{tpu_custom_call.1} parent=11 // pred_fallthru
          _
      $region12: #{tpu_custom_call.1} parent=5 // pred_fallthru
        _
      %p226 = scmp.lt.s32.totalorder %s14, 2
      // Predicated region
      $region25: #{tpu_custom_call.1} parent=5 // pred_check
        %p227 = pneg %p226
      $region26: #{tpu_custom_call.1} parent=5 // pred_check_branch
        %229 = sbr.rel (%p227) target = $region28
      $region27: #{tpu_custom_call.1} parent=5 // pred_region
        // Predicated region
        $region29: #{tpu_custom_call.1} parent=27 // pred_check
          %p230 = pneg %p55
        $region30: #{tpu_custom_call.1} parent=27 // pred_check_branch
          %232 = sbr.rel (%p230) target = $region32
        $region31: #{tpu_custom_call.1} parent=27 // pred_region
          %p233 = scmp.lt.s32.totalorder %s14, 1
          %s234 = scalar_select %p233, %s14, 1
          %s235 = smul.addr %s234, 4
          %s236 = smul.addr %s235, 4
          %s237 = scalar_lea.vmem %s1, %s236
        $region32: #{tpu_custom_call.1} parent=27 // pred_fallthru
          _
        // Predicated region
        $region33: #{tpu_custom_call.1} parent=27 // pred_check
          %p238 = pneg %p81
        $region34: #{tpu_custom_call.1} parent=27 // pred_check_branch
          %240 = sbr.rel (%p238) target = $region36
        $region35: #{tpu_custom_call.1} parent=27 // pred_region
          %p241 = scmp.lt.s32.totalorder %s14, 1
          %s242 = scalar_select %p241, %s14, 1
          %s243 = smul.addr %s242, 4
          %s244 = smul.addr %s243, 4
          %s245 = scalar_lea.vmem %s2, %s244
        $region36: #{tpu_custom_call.1} parent=27 // pred_fallthru
          _
        // Predicated region
        $region37: #{tpu_custom_call.1} parent=27 // pred_check
          %p246 = pneg %p107
        $region38: #{tpu_custom_call.1} parent=27 // pred_check_branch
          %248 = sbr.rel (%p246) target = $region40
        $region39: #{tpu_custom_call.1} parent=27 // pred_region
          %p249 = scmp.lt.s32.totalorder %s14, 1
          %s250 = scalar_select %p249, %s14, 1
          %s251 = smul.addr %s250, 16
          %s252 = smul.addr %s251, 4
          %s253 = scalar_lea.vmem %s3, %s252
        $region40: #{tpu_custom_call.1} parent=27 // pred_fallthru
          _
        // Predicated region
        $region41: #{tpu_custom_call.1} parent=27 // pred_check
          %p254 = pneg %p133
        $region42: #{tpu_custom_call.1} parent=27 // pred_check_branch
          %256 = sbr.rel (%p254) target = $region44
        $region43: #{tpu_custom_call.1} parent=27 // pred_region
          %p257 = scmp.lt.s32.totalorder %s14, 1
          %s258 = scalar_select %p257, %s14, 1
          %s259 = smul.addr %s258, 8
          %s260 = scalar_lea.vmem %s4, %s259
        $region44: #{tpu_custom_call.1} parent=27 // pred_fallthru
          _
      $region28: #{tpu_custom_call.1} parent=5 // pred_fallthru
        _
      %p261 = scmp.le.s32.totalorder 1, %s14
      %p262 = scmp.lt.s32.totalorder %s14, 3
      %p263 = pnand %p261, %p262
      %p264 = pneg %p263
      // Predicated region
      $region45: #{tpu_custom_call.1} parent=5 // pred_check
        _
      $region46: #{tpu_custom_call.1} parent=5 // pred_check_branch
        %266 = sbr.rel (%p263) target = $region48
      $region47: #{tpu_custom_call.1} parent=5 // pred_region
        %s267 = ssub.s32 %s14, 1
        %p268 = pneg %p35
        %p269 = pneg %p32
        %p270 = scmp.lt.s32.totalorder %s19, 1
        %s271 = scalar_select %p270, %s19, 1
        %s272 = smul.addr %s271, 4
        %s273 = smul.addr %s272, 4
        %s274 = scalar_lea.vmem %s1, %s273
        %p275 = pneg %p61
        %p276 = pneg %p58
        %p277 = scmp.lt.s32.totalorder %s19, 1
        %s278 = scalar_select %p277, %s19, 1
        %s279 = smul.addr %s278, 4
        %s280 = smul.addr %s279, 4
        %s281 = scalar_lea.vmem %s2, %s280
        %p282 = pneg %p87
        %p283 = pneg %p84
        %p284 = scmp.lt.s32.totalorder %s19, 1
        %s285 = scalar_select %p284, %s19, 1
        %s286 = smul.addr %s285, 16
        %s287 = smul.addr %s286, 4
        %s288 = scalar_lea.vmem %s3, %s287
        %p289 = pneg %p113
        %p290 = pneg %p110
        %p291 = scmp.lt.s32.totalorder %s19, 1
        %s292 = scalar_select %p291, %s19, 1
        %s293 = smul.addr %s292, 8
        %s294 = scalar_lea.vmem %s4, %s293
        %p295 = pneg %p139
        %p296 = pneg %p136
        %p297 = pneg %p160
        %p298 = pneg %p157
        %p299 = pneg %p181
        %p300 = pneg %p178
        %p301 = pneg %p202
        %p302 = pneg %p199
        %p303 = scmp.lt.s32.totalorder %s19, 1
        %s304 = scalar_select %p303, %s19, 1
        %s305 = smul.addr %s304, 4
        %s306 = smul.addr %s305, 4
        %s307 = scalar_lea.vmem %s1, %s306
        %p308 = scmp.lt.s32.totalorder %s19, 1
        %s309 = scalar_select %p308, %s19, 1
        %s310 = smul.addr %s309, 4
        %s311 = smul.addr %s310, 4
        %s312 = scalar_lea.vmem %s2, %s311
        %p313 = scmp.lt.s32.totalorder %s19, 1
        %s314 = scalar_select %p313, %s19, 1
        %s315 = smul.addr %s314, 16
        %s316 = smul.addr %s315, 4
        %s317 = scalar_lea.vmem %s3, %s316
        %p318 = scmp.lt.s32.totalorder %s19, 1
        %s319 = scalar_select %p318, %s19, 1
        %s320 = smul.addr %s319, 8
        %s321 = scalar_lea.vmem %s4, %s320
        %p323 = scmp.eq.s32.totalorder %s19, 0
        // Predicated region
        $region49: #{tpu_custom_call.1} parent=47 // pred_check
          %p324 = pneg %p323
        $region50: #{tpu_custom_call.1} parent=47 // pred_check_branch
          %326 = sbr.rel (%p324) target = $region52
        $region51: #{tpu_custom_call.1} parent=47 // pred_region
          %v327 = vld [vmem:[%s0] sm:$0xf]
          %v328 = vld [vmem:[%s0 + $0x4] sm:$0xf]
          %v329 = vunpack.c.l.bf16 %v327
          %v330 = vunpack.c.l.bf16 %v328
          %vm331 = vcmask 261120
          %332 = vst.msk [vmem:[#allocation2] sm:$0xff] %vm331, %v329
          %333 = vst.msk [vmem:[#allocation2 + $0x8] sm:$0xff] %vm331, %v330
        $region52: #{tpu_custom_call.1} parent=47 // pred_fallthru
          _
        %v334 = vld [vmem:[#allocation2] sm:$0xff]
        %v335 = vld [vmem:[#allocation2 + $0x8] sm:$0xff]
        %v336 = vld [vmem:[%s321] sm:$0xff]
        %v337 = vpack.c.bf16 %v335, %v334
        %v338 = vld [vmem:[%s307] sm:$0xf]
        %v339 = vld [vmem:[%s307 + $0x4] sm:$0xf]
        %v340 = vld [vmem:[%s307 + $0x8] sm:$0xf]
        %v341 = vld [vmem:[%s307 + $0xc] sm:$0xf]
        %v346 = vunpack.c.l.b16 %v338
        %v347 = vunpack.c.l.b16 %v339
        %v348 = vunpack.c.l.b16 %v340
        %v349 = vunpack.c.l.b16 %v341
        %v350 = vpack.c.b16 %v347, %v346
        %v351 = vpack.c.b16 %v349, %v348
        %vm354 = vcmask 261120
        %v356 = vsel %vm354, %v337, 0
        %358 = vmatprep.subr.bf16.mxu0 0
        %359 = vmatpush1.bf16.msra.mxu0 %v350
        %360 = vmatprep.subr.bf16.mxu0 0
        %361 = vmatpush1.bf16.msra.mxu0 %v351
        %362 = vmatprep.subr.bf16.mxu0 0
        %363 = vmatpush1.bf16.msra.mxu0 0
        %364 = vmatprep.subr.bf16.mxu0 0
        %365 = vmatpush1.bf16.msra.mxu0 0
        %366 = vmatprep.subr.bf16.mxu0 0
        %367 = vmatpush1.bf16.msra.mxu0 0
        %368 = vmatprep.subr.bf16.mxu0 0
        %369 = vmatpush1.bf16.msra.mxu0 0
        %370 = vmatprep.subr.bf16.mxu0 0
        %371 = vmatpush1.bf16.msra.mxu0 0
        %372 = vmatprep.subr.bf16.mxu0 0
        %373 = vmatpush1.bf16.msra.mxu0 0
        %374 = vmatprep.subr.bf16.mxu0 0
        %375 = vmatpush1.bf16.msra.mxu0 0
        %376 = vmatprep.subr.bf16.mxu0 0
        %377 = vmatpush1.bf16.msra.mxu0 0
        %378 = vmatprep.subr.bf16.mxu0 0
        %379 = vmatpush1.bf16.msra.mxu0 0
        %380 = vmatprep.subr.bf16.mxu0 0
        %381 = vmatpush1.bf16.msra.mxu0 0
        %382 = vmatprep.subr.bf16.mxu0 0
        %383 = vmatpush1.bf16.msra.mxu0 0
        %384 = vmatprep.subr.bf16.mxu0 0
        %385 = vmatpush1.bf16.msra.mxu0 0
        %386 = vmatprep.subr.bf16.mxu0 0
        %387 = vmatpush1.bf16.msra.mxu0 0
        %388 = vmatprep.subr.bf16.mxu0 0
        %389 = vmatpush1.bf16.msra.mxu0 0
        %390 = vmatprep.mubr.bf16.mxu0 0
        %391 = vmatmul.mubr.bf16.gmra.mrb[0].mxu0 %v356
        %v392 = vpop.f32.mrb[0].mxu0
        %v393 = vadd.f32 0.0, %v392
        %v394 = vpop.f32.mrb[0].mxu0
        %v395 = vpop.f32.mrb[0].mxu0
        %v396 = vadd.f32 0.0, %v395
        %v397 = vpop.f32.mrb[0].mxu0
        %398 = vdwg.mxu0
        %v399 = vlaneseq
        %v400 = vshrl.u32 %v399, 7
        %v401 = vlaneseq
        %v402 = vand.u32 %v401, 127
        %vm403 = vcmp.le.s32.totalorder %v402, %v400
        %v404 = vmul.f32 %v393, 0.35355338
        %v405 = vmul.f32 %v396, 0.35355338
        %407 = vrot.lane.b32.xlu0 %v393, 96
        %v408 = vpop.permute.xlu0 %407
        %vm409 = vcmask 64512
        %v411 = vsel %vm409, %v404, 0
        %v413 = vsel %vm409, %v408, 0
        %415 = vmatprep.subr.mxu0 0.0
        %416 = vmatpush1.xpose.msra.mxu0 %v413
        %417 = vmatprep.subr.mxu0 0.0
        %418 = vmatpush1.xpose.msra.mxu0 0.0
        %419 = vmatprep.subr.mxu0 0.0
        %420 = vmatpush1.xpose.msra.mxu0 0.0
        %421 = vmatprep.subr.mxu0 0.0
        %422 = vmatpush1.xpose.msra.mxu0 0.0
        %423 = vmatprep.subr.mxu0 0.0
        %424 = vmatpush1.xpose.msra.mxu0 0.0
        %425 = vmatprep.subr.mxu0 0.0
        %426 = vmatpush1.xpose.msra.mxu0 0.0
        %427 = vmatprep.subr.mxu0 0.0
        %428 = vmatpush1.xpose.msra.mxu0 0.0
        %429 = vmatprep.subr.mxu0 0.0
        %430 = vmatpush1.xpose.msra.mxu0 0.0
        %431 = vmatprep.subr.mxu0 0.0
        %432 = vmatpush1.xpose.msra.mxu0 0.0
        %433 = vmatprep.subr.mxu0 0.0
        %434 = vmatpush1.xpose.msra.mxu0 0.0
        %435 = vmatprep.subr.mxu0 0.0
        %436 = vmatpush1.xpose.msra.mxu0 0.0
        %437 = vmatprep.subr.mxu0 0.0
        %438 = vmatpush1.xpose.msra.mxu0 0.0
        %439 = vmatprep.subr.mxu0 0.0
        %440 = vmatpush1.xpose.msra.mxu0 0.0
        %441 = vmatprep.subr.mxu0 0.0
        %442 = vmatpush1.xpose.msra.mxu0 0.0
        %443 = vmatprep.subr.mxu0 0.0
        %444 = vmatpush1.xpose.msra.mxu0 0.0
        %445 = vmatprep.subr.mxu0 0.0
        %446 = vmatpush1.xpose.msra.mxu0 0.0
        %447 = vmatprep.subr.mxu0 0.0
        %448 = vmatpush1.xpose.msra.mxu0 0.0
        %449 = vmatprep.subr.mxu0 0.0
        %450 = vmatpush1.xpose.msra.mxu0 0.0
        %451 = vmatprep.subr.mxu0 0.0
        %452 = vmatpush1.xpose.msra.mxu0 0.0
        %453 = vmatprep.subr.mxu0 0.0
        %454 = vmatpush1.xpose.msra.mxu0 0.0
        %455 = vmatprep.subr.mxu0 0.0
        %456 = vmatpush1.xpose.msra.mxu0 0.0
        %457 = vmatprep.subr.mxu0 0.0
        %458 = vmatpush1.xpose.msra.mxu0 0.0
        %459 = vmatprep.subr.mxu0 0.0
        %460 = vmatpush1.xpose.msra.mxu0 0.0
        %461 = vmatprep.subr.mxu0 0.0
        %462 = vmatpush1.xpose.msra.mxu0 0.0
        %463 = vmatprep.subr.mxu0 0.0
        %464 = vmatpush1.xpose.msra.mxu0 0.0
        %465 = vmatprep.subr.mxu0 0.0
        %466 = vmatpush1.xpose.msra.mxu0 0.0
        %467 = vmatprep.subr.mxu0 0.0
        %468 = vmatpush1.xpose.msra.mxu0 0.0
        %469 = vmatprep.subr.mxu0 0.0
        %470 = vmatpush1.xpose.msra.mxu0 0.0
        %471 = vmatprep.subr.mxu0 0.0
        %472 = vmatpush1.xpose.msra.mxu0 0.0
        %473 = vmatprep.subr.mxu0 0.0
        %474 = vmatpush1.xpose.msra.mxu0 0.0
        %475 = vmatprep.subr.mxu0 0.0
        %476 = vmatpush1.xpose.msra.mxu0 0.0
        %477 = vmatprep.subr.mxu0 0.0
        %478 = vmatpush1.xpose.msra.mxu0 0.0
        %479 = vmatprep.mubr.f32.mxu0 0.0
        %480 = vmatmul.mubr.f32.gmra.mrb[0].mxu0 %v411
        %v481 = vpop.f32.mrb[0].mxu0
        %v482 = vadd.f32 0.0, %v481
        %v483 = vpop.f32.mrb[0].mxu0
        %484 = vdwg.mxu0
        %486 = vrot.lane.b32.xlu0 %v396, 96
        %v487 = vpop.permute.xlu0 %486
        %v489 = vsel %vm409, %v405, 0
        %v491 = vsel %vm409, %v487, 0
        %493 = vmatprep.subr.mxu0 0.0
        %494 = vmatpush1.xpose.msra.mxu0 %v491
        %495 = vmatprep.subr.mxu0 0.0
        %496 = vmatpush1.xpose.msra.mxu0 0.0
        %497 = vmatprep.subr.mxu0 0.0
        %498 = vmatpush1.xpose.msra.mxu0 0.0
        %499 = vmatprep.subr.mxu0 0.0
        %500 = vmatpush1.xpose.msra.mxu0 0.0
        %501 = vmatprep.subr.mxu0 0.0
        %502 = vmatpush1.xpose.msra.mxu0 0.0
        %503 = vmatprep.subr.mxu0 0.0
        %504 = vmatpush1.xpose.msra.mxu0 0.0
        %505 = vmatprep.subr.mxu0 0.0
        %506 = vmatpush1.xpose.msra.mxu0 0.0
        %507 = vmatprep.subr.mxu0 0.0
        %508 = vmatpush1.xpose.msra.mxu0 0.0
        %509 = vmatprep.subr.mxu0 0.0
        %510 = vmatpush1.xpose.msra.mxu0 0.0
        %511 = vmatprep.subr.mxu0 0.0
        %512 = vmatpush1.xpose.msra.mxu0 0.0
        %513 = vmatprep.subr.mxu0 0.0
        %514 = vmatpush1.xpose.msra.mxu0 0.0
        %515 = vmatprep.subr.mxu0 0.0
        %516 = vmatpush1.xpose.msra.mxu0 0.0
        %517 = vmatprep.subr.mxu0 0.0
        %518 = vmatpush1.xpose.msra.mxu0 0.0
        %519 = vmatprep.subr.mxu0 0.0
        %520 = vmatpush1.xpose.msra.mxu0 0.0
        %521 = vmatprep.subr.mxu0 0.0
        %522 = vmatpush1.xpose.msra.mxu0 0.0
        %523 = vmatprep.subr.mxu0 0.0
        %524 = vmatpush1.xpose.msra.mxu0 0.0
        %525 = vmatprep.subr.mxu0 0.0
        %526 = vmatpush1.xpose.msra.mxu0 0.0
        %527 = vmatprep.subr.mxu0 0.0
        %528 = vmatpush1.xpose.msra.mxu0 0.0
        %529 = vmatprep.subr.mxu0 0.0
        %530 = vmatpush1.xpose.msra.mxu0 0.0
        %531 = vmatprep.subr.mxu0 0.0
        %532 = vmatpush1.xpose.msra.mxu0 0.0
        %533 = vmatprep.subr.mxu0 0.0
        %534 = vmatpush1.xpose.msra.mxu0 0.0
        %535 = vmatprep.subr.mxu0 0.0
        %536 = vmatpush1.xpose.msra.mxu0 0.0
        %537 = vmatprep.subr.mxu0 0.0
        %538 = vmatpush1.xpose.msra.mxu0 0.0
        %539 = vmatprep.subr.mxu0 0.0
        %540 = vmatpush1.xpose.msra.mxu0 0.0
        %541 = vmatprep.subr.mxu0 0.0
        %542 = vmatpush1.xpose.msra.mxu0 0.0
        %543 = vmatprep.subr.mxu0 0.0
        %544 = vmatpush1.xpose.msra.mxu0 0.0
        %545 = vmatprep.subr.mxu0 0.0
        %546 = vmatpush1.xpose.msra.mxu0 0.0
        %547 = vmatprep.subr.mxu0 0.0
        %548 = vmatpush1.xpose.msra.mxu0 0.0
        %549 = vmatprep.subr.mxu0 0.0
        %550 = vmatpush1.xpose.msra.mxu0 0.0
        %551 = vmatprep.subr.mxu0 0.0
        %552 = vmatpush1.xpose.msra.mxu0 0.0
        %553 = vmatprep.subr.mxu0 0.0
        %554 = vmatpush1.xpose.msra.mxu0 0.0
        %555 = vmatprep.subr.mxu0 0.0
        %556 = vmatpush1.xpose.msra.mxu0 0.0
        %557 = vmatprep.mubr.f32.mxu0 0.0
        %558 = vmatmul.mubr.f32.gmra.mrb[0].mxu0 %v489
        %v559 = vpop.f32.mrb[0].mxu0
        %v560 = vadd.f32 0.0, %v559
        %v561 = vpop.f32.mrb[0].mxu0
        %562 = vdwg.mxu0
        %v563 = vsel %vm403, 1, 0
        %vm564 = vcmp.eq.s32.totalorder %v563, 1
        %v565 = vsel %vm564, %v482, -inf
        %v566 = vsel %vm564, %v560, -inf
        %v567 = vsel %vm409, %v565, -inf
        %568 = vmax.xlane.f32.xlu0 %v567
        %v569 = vpop.xlane.xlu0 %568
        %v570 = vsel %vm409, %v566, -inf
        %571 = vmax.xlane.f32.xlu0 %v570
        %v572 = vpop.xlane.xlu0 %571
        %v573 = vsub.f32 %v565, %v569
        %v574 = vsub.f32 %v566, %v572
        %v575 = vmul.f32 %v573, 1.442695
        %v576 = vpow.pop %v575
        %v577 = vmul.f32 %v574, 1.442695
        %v578 = vpow.pop %v577
        %v579 = vsel %vm409, %v576, 0.0
        %580 = vadd.xlane.f32.xlu0 %v579
        %v581 = vpop.xlane.xlu0 %580
        %v582 = vsel %vm409, %v578, 0.0
        %583 = vadd.xlane.f32.xlu0 %v582
        %v584 = vpop.xlane.xlu0 %583
        %v585 = vrcp.pop %v581
        %v586 = vrcp.pop %v584
        %v587 = vmul.f32 %v576, %v585
        %v588 = vmul.f32 %v578, %v586
        %589 = vrot.lane.b32.xlu0 %v393, 64
        %v590 = vpop.permute.xlu0 %589
        %v593 = vsel %vm409, %v587, 0
        %595 = vmatprep.subr.mxu0 0.0
        %596 = vmatpush1.msra.mxu0 %v590
        %597 = vmatprep.subr.mxu0 0.0
        %598 = vmatpush1.msra.mxu0 0.0
        %599 = vmatprep.subr.mxu0 0.0
        %600 = vmatpush1.msra.mxu0 0.0
        %601 = vmatprep.subr.mxu0 0.0
        %602 = vmatpush1.msra.mxu0 0.0
        %603 = vmatprep.subr.mxu0 0.0
        %604 = vmatpush1.msra.mxu0 0.0
        %605 = vmatprep.subr.mxu0 0.0
        %606 = vmatpush1.msra.mxu0 0.0
        %607 = vmatprep.subr.mxu0 0.0
        %608 = vmatpush1.msra.mxu0 0.0
        %609 = vmatprep.subr.mxu0 0.0
        %610 = vmatpush1.msra.mxu0 0.0
        %611 = vmatprep.subr.mxu0 0.0
        %612 = vmatpush1.msra.mxu0 0.0
        %613 = vmatprep.subr.mxu0 0.0
        %614 = vmatpush1.msra.mxu0 0.0
        %615 = vmatprep.subr.mxu0 0.0
        %616 = vmatpush1.msra.mxu0 0.0
        %617 = vmatprep.subr.mxu0 0.0
        %618 = vmatpush1.msra.mxu0 0.0
        %619 = vmatprep.subr.mxu0 0.0
        %620 = vmatpush1.msra.mxu0 0.0
        %621 = vmatprep.subr.mxu0 0.0
        %622 = vmatpush1.msra.mxu0 0.0
        %623 = vmatprep.subr.mxu0 0.0
        %624 = vmatpush1.msra.mxu0 0.0
        %625 = vmatprep.subr.mxu0 0.0
        %626 = vmatpush1.msra.mxu0 0.0
        %627 = vmatprep.subr.mxu0 0.0
        %628 = vmatpush1.msra.mxu0 0.0
        %629 = vmatprep.subr.mxu0 0.0
        %630 = vmatpush1.msra.mxu0 0.0
        %631 = vmatprep.subr.mxu0 0.0
        %632 = vmatpush1.msra.mxu0 0.0
        %633 = vmatprep.subr.mxu0 0.0
        %634 = vmatpush1.msra.mxu0 0.0
        %635 = vmatprep.subr.mxu0 0.0
        %636 = vmatpush1.msra.mxu0 0.0
        %637 = vmatprep.subr.mxu0 0.0
        %638 = vmatpush1.msra.mxu0 0.0
        %639 = vmatprep.subr.mxu0 0.0
        %640 = vmatpush1.msra.mxu0 0.0
        %641 = vmatprep.subr.mxu0 0.0
        %642 = vmatpush1.msra.mxu0 0.0
        %643 = vmatprep.subr.mxu0 0.0
        %644 = vmatpush1.msra.mxu0 0.0
        %645 = vmatprep.subr.mxu0 0.0
        %646 = vmatpush1.msra.mxu0 0.0
        %647 = vmatprep.subr.mxu0 0.0
        %648 = vmatpush1.msra.mxu0 0.0
        %649 = vmatprep.subr.mxu0 0.0
        %650 = vmatpush1.msra.mxu0 0.0
        %651 = vmatprep.subr.mxu0 0.0
        %652 = vmatpush1.msra.mxu0 0.0
        %653 = vmatprep.subr.mxu0 0.0
        %654 = vmatpush1.msra.mxu0 0.0
        %655 = vmatprep.subr.mxu0 0.0
        %656 = vmatpush1.msra.mxu0 0.0
        %657 = vmatprep.subr.mxu0 0.0
        %658 = vmatpush1.msra.mxu0 0.0
        %659 = vmatprep.mubr.f32.mxu0 0.0
        %660 = vmatmul.mubr.f32.gmra.mrb[0].mxu0 %v593
        %v661 = vpop.f32.mrb[0].mxu0
        %v662 = vadd.f32 0.0, %v661
        %v663 = vpop.f32.mrb[0].mxu0
        %664 = vdwg.mxu0
        %665 = vrot.lane.b32.xlu0 %v396, 64
        %v666 = vpop.permute.xlu0 %665
        %v669 = vsel %vm409, %v588, 0
        %671 = vmatprep.subr.mxu0 0.0
        %672 = vmatpush1.msra.mxu0 %v666
        %673 = vmatprep.subr.mxu0 0.0
        %674 = vmatpush1.msra.mxu0 0.0
        %675 = vmatprep.subr.mxu0 0.0
        %676 = vmatpush1.msra.mxu0 0.0
        %677 = vmatprep.subr.mxu0 0.0
        %678 = vmatpush1.msra.mxu0 0.0
        %679 = vmatprep.subr.mxu0 0.0
        %680 = vmatpush1.msra.mxu0 0.0
        %681 = vmatprep.subr.mxu0 0.0
        %682 = vmatpush1.msra.mxu0 0.0
        %683 = vmatprep.subr.mxu0 0.0
        %684 = vmatpush1.msra.mxu0 0.0
        %685 = vmatprep.subr.mxu0 0.0
        %686 = vmatpush1.msra.mxu0 0.0
        %687 = vmatprep.subr.mxu0 0.0
        %688 = vmatpush1.msra.mxu0 0.0
        %689 = vmatprep.subr.mxu0 0.0
        %690 = vmatpush1.msra.mxu0 0.0
        %691 = vmatprep.subr.mxu0 0.0
        %692 = vmatpush1.msra.mxu0 0.0
        %693 = vmatprep.subr.mxu0 0.0
        %694 = vmatpush1.msra.mxu0 0.0
        %695 = vmatprep.subr.mxu0 0.0
        %696 = vmatpush1.msra.mxu0 0.0
        %697 = vmatprep.subr.mxu0 0.0
        %698 = vmatpush1.msra.mxu0 0.0
        %699 = vmatprep.subr.mxu0 0.0
        %700 = vmatpush1.msra.mxu0 0.0
        %701 = vmatprep.subr.mxu0 0.0
        %702 = vmatpush1.msra.mxu0 0.0
        %703 = vmatprep.subr.mxu0 0.0
        %704 = vmatpush1.msra.mxu0 0.0
        %705 = vmatprep.subr.mxu0 0.0
        %706 = vmatpush1.msra.mxu0 0.0
        %707 = vmatprep.subr.mxu0 0.0
        %708 = vmatpush1.msra.mxu0 0.0
        %709 = vmatprep.subr.mxu0 0.0
        %710 = vmatpush1.msra.mxu0 0.0
        %711 = vmatprep.subr.mxu0 0.0
        %712 = vmatpush1.msra.mxu0 0.0
        %713 = vmatprep.subr.mxu0 0.0
        %714 = vmatpush1.msra.mxu0 0.0
        %715 = vmatprep.subr.mxu0 0.0
        %716 = vmatpush1.msra.mxu0 0.0
        %717 = vmatprep.subr.mxu0 0.0
        %718 = vmatpush1.msra.mxu0 0.0
        %719 = vmatprep.subr.mxu0 0.0
        %720 = vmatpush1.msra.mxu0 0.0
        %721 = vmatprep.subr.mxu0 0.0
        %722 = vmatpush1.msra.mxu0 0.0
        %723 = vmatprep.subr.mxu0 0.0
        %724 = vmatpush1.msra.mxu0 0.0
        %725 = vmatprep.subr.mxu0 0.0
        %726 = vmatpush1.msra.mxu0 0.0
        %727 = vmatprep.subr.mxu0 0.0
        %728 = vmatpush1.msra.mxu0 0.0
        %729 = vmatprep.subr.mxu0 0.0
        %730 = vmatpush1.msra.mxu0 0.0
        %731 = vmatprep.subr.mxu0 0.0
        %732 = vmatpush1.msra.mxu0 0.0
        %733 = vmatprep.subr.mxu0 0.0
        %734 = vmatpush1.msra.mxu0 0.0
        %735 = vmatprep.mubr.f32.mxu0 0.0
        %736 = vmatmul.mubr.f32.gmra.mrb[0].mxu0 %v669
        %v737 = vpop.f32.mrb[0].mxu0
        %v738 = vadd.f32 0.0, %v737
        %v739 = vpop.f32.mrb[0].mxu0
        %740 = vdwg.mxu0
        %741 = vrot.lane.b32.xlu0 %v404, 120
        %v742 = vpop.permute.xlu0 %741
        %743 = vrot.lane.b32.xlu0 %v393, 88
        %v744 = vpop.permute.xlu0 %743
        %v745 = vsel %vm409, %v742, 0
        %v747 = vsel %vm409, %v744, 0
        %749 = vmatprep.subr.mxu0 0.0
        %750 = vmatpush1.xpose.msra.mxu0 %v747
        %751 = vmatprep.subr.mxu0 0.0
        %752 = vmatpush1.xpose.msra.mxu0 0.0
        %753 = vmatprep.subr.mxu0 0.0
        %754 = vmatpush1.xpose.msra.mxu0 0.0
        %755 = vmatprep.subr.mxu0 0.0
        %756 = vmatpush1.xpose.msra.mxu0 0.0
        %757 = vmatprep.subr.mxu0 0.0
        %758 = vmatpush1.xpose.msra.mxu0 0.0
        %759 = vmatprep.subr.mxu0 0.0
        %760 = vmatpush1.xpose.msra.mxu0 0.0
        %761 = vmatprep.subr.mxu0 0.0
        %762 = vmatpush1.xpose.msra.mxu0 0.0
        %763 = vmatprep.subr.mxu0 0.0
        %764 = vmatpush1.xpose.msra.mxu0 0.0
        %765 = vmatprep.subr.mxu0 0.0
        %766 = vmatpush1.xpose.msra.mxu0 0.0
        %767 = vmatprep.subr.mxu0 0.0
        %768 = vmatpush1.xpose.msra.mxu0 0.0
        %769 = vmatprep.subr.mxu0 0.0
        %770 = vmatpush1.xpose.msra.mxu0 0.0
        %771 = vmatprep.subr.mxu0 0.0
        %772 = vmatpush1.xpose.msra.mxu0 0.0
        %773 = vmatprep.subr.mxu0 0.0
        %774 = vmatpush1.xpose.msra.mxu0 0.0
        %775 = vmatprep.subr.mxu0 0.0
        %776 = vmatpush1.xpose.msra.mxu0 0.0
        %777 = vmatprep.subr.mxu0 0.0
        %778 = vmatpush1.xpose.msra.mxu0 0.0
        %779 = vmatprep.subr.mxu0 0.0
        %780 = vmatpush1.xpose.msra.mxu0 0.0
        %781 = vmatprep.subr.mxu0 0.0
        %782 = vmatpush1.xpose.msra.mxu0 0.0
        %783 = vmatprep.subr.mxu0 0.0
        %784 = vmatpush1.xpose.msra.mxu0 0.0
        %785 = vmatprep.subr.mxu0 0.0
        %786 = vmatpush1.xpose.msra.mxu0 0.0
        %787 = vmatprep.subr.mxu0 0.0
        %788 = vmatpush1.xpose.msra.mxu0 0.0
        %789 = vmatprep.subr.mxu0 0.0
        %790 = vmatpush1.xpose.msra.mxu0 0.0
        %791 = vmatprep.subr.mxu0 0.0
        %792 = vmatpush1.xpose.msra.mxu0 0.0
        %793 = vmatprep.subr.mxu0 0.0
        %794 = vmatpush1.xpose.msra.mxu0 0.0
        %795 = vmatprep.subr.mxu0 0.0
        %796 = vmatpush1.xpose.msra.mxu0 0.0
        %797 = vmatprep.subr.mxu0 0.0
        %798 = vmatpush1.xpose.msra.mxu0 0.0
        %799 = vmatprep.subr.mxu0 0.0
        %800 = vmatpush1.xpose.msra.mxu0 0.0
        %801 = vmatprep.subr.mxu0 0.0
        %802 = vmatpush1.xpose.msra.mxu0 0.0
        %803 = vmatprep.subr.mxu0 0.0
        %804 = vmatpush1.xpose.msra.mxu0 0.0
        %805 = vmatprep.subr.mxu0 0.0
        %806 = vmatpush1.xpose.msra.mxu0 0.0
        %807 = vmatprep.subr.mxu0 0.0
        %808 = vmatpush1.xpose.msra.mxu0 0.0
        %809 = vmatprep.subr.mxu0 0.0
        %810 = vmatpush1.xpose.msra.mxu0 0.0
        %811 = vmatprep.subr.mxu0 0.0
        %812 = vmatpush1.xpose.msra.mxu0 0.0
        %813 = vmatprep.mubr.f32.mxu0 0.0
        %814 = vmatmul.mubr.f32.gmra.mrb[0].mxu0 %v745
        %v815 = vpop.f32.mrb[0].mxu0
        %v816 = vadd.f32 0.0, %v815
        %v817 = vpop.f32.mrb[0].mxu0
        %818 = vdwg.mxu0
        %819 = vrot.lane.b32.xlu0 %v405, 120
        %v820 = vpop.permute.xlu0 %819
        %821 = vrot.lane.b32.xlu0 %v396, 88
        %v822 = vpop.permute.xlu0 %821
        %v823 = vsel %vm409, %v820, 0
        %v825 = vsel %vm409, %v822, 0
        %827 = vmatprep.subr.mxu0 0.0
        %828 = vmatpush1.xpose.msra.mxu0 %v825
        %829 = vmatprep.subr.mxu0 0.0
        %830 = vmatpush1.xpose.msra.mxu0 0.0
        %831 = vmatprep.subr.mxu0 0.0
        %832 = vmatpush1.xpose.msra.mxu0 0.0
        %833 = vmatprep.subr.mxu0 0.0
        %834 = vmatpush1.xpose.msra.mxu0 0.0
        %835 = vmatprep.subr.mxu0 0.0
        %836 = vmatpush1.xpose.msra.mxu0 0.0
        %837 = vmatprep.subr.mxu0 0.0
        %838 = vmatpush1.xpose.msra.mxu0 0.0
        %839 = vmatprep.subr.mxu0 0.0
        %840 = vmatpush1.xpose.msra.mxu0 0.0
        %841 = vmatprep.subr.mxu0 0.0
        %842 = vmatpush1.xpose.msra.mxu0 0.0
        %843 = vmatprep.subr.mxu0 0.0
        %844 = vmatpush1.xpose.msra.mxu0 0.0
        %845 = vmatprep.subr.mxu0 0.0
        %846 = vmatpush1.xpose.msra.mxu0 0.0
        %847 = vmatprep.subr.mxu0 0.0
        %848 = vmatpush1.xpose.msra.mxu0 0.0
        %849 = vmatprep.subr.mxu0 0.0
        %850 = vmatpush1.xpose.msra.mxu0 0.0
        %851 = vmatprep.subr.mxu0 0.0
        %852 = vmatpush1.xpose.msra.mxu0 0.0
        %853 = vmatprep.subr.mxu0 0.0
        %854 = vmatpush1.xpose.msra.mxu0 0.0
        %855 = vmatprep.subr.mxu0 0.0
        %856 = vmatpush1.xpose.msra.mxu0 0.0
        %857 = vmatprep.subr.mxu0 0.0
        %858 = vmatpush1.xpose.msra.mxu0 0.0
        %859 = vmatprep.subr.mxu0 0.0
        %860 = vmatpush1.xpose.msra.mxu0 0.0
        %861 = vmatprep.subr.mxu0 0.0
        %862 = vmatpush1.xpose.msra.mxu0 0.0
        %863 = vmatprep.subr.mxu0 0.0
        %864 = vmatpush1.xpose.msra.mxu0 0.0
        %865 = vmatprep.subr.mxu0 0.0
        %866 = vmatpush1.xpose.msra.mxu0 0.0
        %867 = vmatprep.subr.mxu0 0.0
        %868 = vmatpush1.xpose.msra.mxu0 0.0
        %869 = vmatprep.subr.mxu0 0.0
        %870 = vmatpush1.xpose.msra.mxu0 0.0
        %871 = vmatprep.subr.mxu0 0.0
        %872 = vmatpush1.xpose.msra.mxu0 0.0
        %873 = vmatprep.subr.mxu0 0.0
        %874 = vmatpush1.xpose.msra.mxu0 0.0
        %875 = vmatprep.subr.mxu0 0.0
        %876 = vmatpush1.xpose.msra.mxu0 0.0
        %877 = vmatprep.subr.mxu0 0.0
        %878 = vmatpush1.xpose.msra.mxu0 0.0
        %879 = vmatprep.subr.mxu0 0.0
        %880 = vmatpush1.xpose.msra.mxu0 0.0
        %881 = vmatprep.subr.mxu0 0.0
        %882 = vmatpush1.xpose.msra.mxu0 0.0
        %883 = vmatprep.subr.mxu0 0.0
        %884 = vmatpush1.xpose.msra.mxu0 0.0
        %885 = vmatprep.subr.mxu0 0.0
        %886 = vmatpush1.xpose.msra.mxu0 0.0
        %887 = vmatprep.subr.mxu0 0.0
        %888 = vmatpush1.xpose.msra.mxu0 0.0
        %889 = vmatprep.subr.mxu0 0.0
        %890 = vmatpush1.xpose.msra.mxu0 0.0
        %891 = vmatprep.mubr.f32.mxu0 0.0
        %892 = vmatmul.mubr.f32.gmra.mrb[0].mxu0 %v823
        %v893 = vpop.f32.mrb[0].mxu0
        %v894 = vadd.f32 0.0, %v893
        %v895 = vpop.f32.mrb[0].mxu0
        %896 = vdwg.mxu0
        %v897 = vsel %vm564, %v816, -inf
        %v898 = vsel %vm564, %v894, -inf
        %v899 = vsel %vm409, %v897, -inf
        %900 = vmax.xlane.f32.xlu0 %v899
        %v901 = vpop.xlane.xlu0 %900
        %v902 = vsel %vm409, %v898, -inf
        %903 = vmax.xlane.f32.xlu0 %v902
        %v904 = vpop.xlane.xlu0 %903
        %v905 = vsub.f32 %v897, %v901
        %v906 = vsub.f32 %v898, %v904
        %v907 = vmul.f32 %v905, 1.442695
        %v908 = vpow.pop %v907
        %v909 = vmul.f32 %v906, 1.442695
        %v910 = vpow.pop %v909
        %v911 = vsel %vm409, %v908, 0.0
        %912 = vadd.xlane.f32.xlu0 %v911
        %v913 = vpop.xlane.xlu0 %912
        %v914 = vsel %vm409, %v910, 0.0
        %915 = vadd.xlane.f32.xlu0 %v914
        %v916 = vpop.xlane.xlu0 %915
        %v917 = vrcp.pop %v913
        %v918 = vrcp.pop %v916
        %v919 = vmul.f32 %v908, %v917
        %v920 = vmul.f32 %v910, %v918
        %921 = vrot.lane.b32.xlu0 %v393, 56
        %v922 = vpop.permute.xlu0 %921
        %v925 = vsel %vm409, %v919, 0
        %927 = vmatprep.subr.mxu0 0.0
        %928 = vmatpush1.msra.mxu0 %v922
        %929 = vmatprep.subr.mxu0 0.0
        %930 = vmatpush1.msra.mxu0 0.0
        %931 = vmatprep.subr.mxu0 0.0
        %932 = vmatpush1.msra.mxu0 0.0
        %933 = vmatprep.subr.mxu0 0.0
        %934 = vmatpush1.msra.mxu0 0.0
        %935 = vmatprep.subr.mxu0 0.0
        %936 = vmatpush1.msra.mxu0 0.0
        %937 = vmatprep.subr.mxu0 0.0
        %938 = vmatpush1.msra.mxu0 0.0
        %939 = vmatprep.subr.mxu0 0.0
        %940 = vmatpush1.msra.mxu0 0.0
        %941 = vmatprep.subr.mxu0 0.0
        %942 = vmatpush1.msra.mxu0 0.0
        %943 = vmatprep.subr.mxu0 0.0
        %944 = vmatpush1.msra.mxu0 0.0
        %945 = vmatprep.subr.mxu0 0.0
        %946 = vmatpush1.msra.mxu0 0.0
        %947 = vmatprep.subr.mxu0 0.0
        %948 = vmatpush1.msra.mxu0 0.0
        %949 = vmatprep.subr.mxu0 0.0
        %950 = vmatpush1.msra.mxu0 0.0
        %951 = vmatprep.subr.mxu0 0.0
        %952 = vmatpush1.msra.mxu0 0.0
        %953 = vmatprep.subr.mxu0 0.0
        %954 = vmatpush1.msra.mxu0 0.0
        %955 = vmatprep.subr.mxu0 0.0
        %956 = vmatpush1.msra.mxu0 0.0
        %957 = vmatprep.subr.mxu0 0.0
        %958 = vmatpush1.msra.mxu0 0.0
        %959 = vmatprep.subr.mxu0 0.0
        %960 = vmatpush1.msra.mxu0 0.0
        %961 = vmatprep.subr.mxu0 0.0
        %962 = vmatpush1.msra.mxu0 0.0
        %963 = vmatprep.subr.mxu0 0.0
        %964 = vmatpush1.msra.mxu0 0.0
        %965 = vmatprep.subr.mxu0 0.0
        %966 = vmatpush1.msra.mxu0 0.0
        %967 = vmatprep.subr.mxu0 0.0
        %968 = vmatpush1.msra.mxu0 0.0
        %969 = vmatprep.subr.mxu0 0.0
        %970 = vmatpush1.msra.mxu0 0.0
        %971 = vmatprep.subr.mxu0 0.0
        %972 = vmatpush1.msra.mxu0 0.0
        %973 = vmatprep.subr.mxu0 0.0
        %974 = vmatpush1.msra.mxu0 0.0
        %975 = vmatprep.subr.mxu0 0.0
        %976 = vmatpush1.msra.mxu0 0.0
        %977 = vmatprep.subr.mxu0 0.0
        %978 = vmatpush1.msra.mxu0 0.0
        %979 = vmatprep.subr.mxu0 0.0
        %980 = vmatpush1.msra.mxu0 0.0
        %981 = vmatprep.subr.mxu0 0.0
        %982 = vmatpush1.msra.mxu0 0.0
        %983 = vmatprep.subr.mxu0 0.0
        %984 = vmatpush1.msra.mxu0 0.0
        %985 = vmatprep.subr.mxu0 0.0
        %986 = vmatpush1.msra.mxu0 0.0
        %987 = vmatprep.subr.mxu0 0.0
        %988 = vmatpush1.msra.mxu0 0.0
        %989 = vmatprep.subr.mxu0 0.0
        %990 = vmatpush1.msra.mxu0 0.0
        %991 = vmatprep.mubr.f32.mxu0 0.0
        %992 = vmatmul.mubr.f32.gmra.mrb[0].mxu0 %v925
        %v993 = vpop.f32.mrb[0].mxu0
        %v994 = vadd.f32 0.0, %v993
        %v995 = vpop.f32.mrb[0].mxu0
        %996 = vdwg.mxu0
        %997 = vrot.lane.b32.xlu0 %v396, 56
        %v998 = vpop.permute.xlu0 %997
        %v1001 = vsel %vm409, %v920, 0
        %1003 = vmatprep.subr.mxu0 0.0
        %1004 = vmatpush1.msra.mxu0 %v998
        %1005 = vmatprep.subr.mxu0 0.0
        %1006 = vmatpush1.msra.mxu0 0.0
        %1007 = vmatprep.subr.mxu0 0.0
        %1008 = vmatpush1.msra.mxu0 0.0
        %1009 = vmatprep.subr.mxu0 0.0
        %1010 = vmatpush1.msra.mxu0 0.0
        %1011 = vmatprep.subr.mxu0 0.0
        %1012 = vmatpush1.msra.mxu0 0.0
        %1013 = vmatprep.subr.mxu0 0.0
        %1014 = vmatpush1.msra.mxu0 0.0
        %1015 = vmatprep.subr.mxu0 0.0
        %1016 = vmatpush1.msra.mxu0 0.0
        %1017 = vmatprep.subr.mxu0 0.0
        %1018 = vmatpush1.msra.mxu0 0.0
        %1019 = vmatprep.subr.mxu0 0.0
        %1020 = vmatpush1.msra.mxu0 0.0
        %1021 = vmatprep.subr.mxu0 0.0
        %1022 = vmatpush1.msra.mxu0 0.0
        %1023 = vmatprep.subr.mxu0 0.0
        %1024 = vmatpush1.msra.mxu0 0.0
        %1025 = vmatprep.subr.mxu0 0.0
        %1026 = vmatpush1.msra.mxu0 0.0
        %1027 = vmatprep.subr.mxu0 0.0
        %1028 = vmatpush1.msra.mxu0 0.0
        %1029 = vmatprep.subr.mxu0 0.0
        %1030 = vmatpush1.msra.mxu0 0.0
        %1031 = vmatprep.subr.mxu0 0.0
        %1032 = vmatpush1.msra.mxu0 0.0
        %1033 = vmatprep.subr.mxu0 0.0
        %1034 = vmatpush1.msra.mxu0 0.0
        %1035 = vmatprep.subr.mxu0 0.0
        %1036 = vmatpush1.msra.mxu0 0.0
        %1037 = vmatprep.subr.mxu0 0.0
        %1038 = vmatpush1.msra.mxu0 0.0
        %1039 = vmatprep.subr.mxu0 0.0
        %1040 = vmatpush1.msra.mxu0 0.0
        %1041 = vmatprep.subr.mxu0 0.0
        %1042 = vmatpush1.msra.mxu0 0.0
        %1043 = vmatprep.subr.mxu0 0.0
        %1044 = vmatpush1.msra.mxu0 0.0
        %1045 = vmatprep.subr.mxu0 0.0
        %1046 = vmatpush1.msra.mxu0 0.0
        %1047 = vmatprep.subr.mxu0 0.0
        %1048 = vmatpush1.msra.mxu0 0.0
        %1049 = vmatprep.subr.mxu0 0.0
        %1050 = vmatpush1.msra.mxu0 0.0
        %1051 = vmatprep.subr.mxu0 0.0
        %1052 = vmatpush1.msra.mxu0 0.0
        %1053 = vmatprep.subr.mxu0 0.0
        %1054 = vmatpush1.msra.mxu0 0.0
        %1055 = vmatprep.subr.mxu0 0.0
        %1056 = vmatpush1.msra.mxu0 0.0
        %1057 = vmatprep.subr.mxu0 0.0
        %1058 = vmatpush1.msra.mxu0 0.0
        %1059 = vmatprep.subr.mxu0 0.0
        %1060 = vmatpush1.msra.mxu0 0.0
        %1061 = vmatprep.subr.mxu0 0.0
        %1062 = vmatpush1.msra.mxu0 0.0
        %1063 = vmatprep.subr.mxu0 0.0
        %1064 = vmatpush1.msra.mxu0 0.0
        %1065 = vmatprep.subr.mxu0 0.0
        %1066 = vmatpush1.msra.mxu0 0.0
        %1067 = vmatprep.mubr.f32.mxu0 0.0
        %1068 = vmatmul.mubr.f32.gmra.mrb[0].mxu0 %v1001
        %v1069 = vpop.f32.mrb[0].mxu0
        %v1070 = vadd.f32 0.0, %v1069
        %v1071 = vpop.f32.mrb[0].mxu0
        %1072 = vdwg.mxu0
        %1073 = vrot.lane.b32.xlu0 %v404, 112
        %v1074 = vpop.permute.xlu0 %1073
        %1075 = vrot.lane.b32.xlu0 %v393, 80
        %v1076 = vpop.permute.xlu0 %1075
        %v1077 = vsel %vm409, %v1074, 0
        %v1079 = vsel %vm409, %v1076, 0
        %1081 = vmatprep.subr.mxu0 0.0
        %1082 = vmatpush1.xpose.msra.mxu0 %v1079
        %1083 = vmatprep.subr.mxu0 0.0
        %1084 = vmatpush1.xpose.msra.mxu0 0.0
        %1085 = vmatprep.subr.mxu0 0.0
        %1086 = vmatpush1.xpose.msra.mxu0 0.0
        %1087 = vmatprep.subr.mxu0 0.0
        %1088 = vmatpush1.xpose.msra.mxu0 0.0
        %1089 = vmatprep.subr.mxu0 0.0
        %1090 = vmatpush1.xpose.msra.mxu0 0.0
        %1091 = vmatprep.subr.mxu0 0.0
        %1092 = vmatpush1.xpose.msra.mxu0 0.0
        %1093 = vmatprep.subr.mxu0 0.0
        %1094 = vmatpush1.xpose.msra.mxu0 0.0
        %1095 = vmatprep.subr.mxu0 0.0
        %1096 = vmatpush1.xpose.msra.mxu0 0.0
        %1097 = vmatprep.subr.mxu0 0.0
        %1098 = vmatpush1.xpose.msra.mxu0 0.0
        %1099 = vmatprep.subr.mxu0 0.0
        %1100 = vmatpush1.xpose.msra.mxu0 0.0
        %1101 = vmatprep.subr.mxu0 0.0
        %1102 = vmatpush1.xpose.msra.mxu0 0.0
        %1103 = vmatprep.subr.mxu0 0.0
        %1104 = vmatpush1.xpose.msra.mxu0 0.0
        %1105 = vmatprep.subr.mxu0 0.0
        %1106 = vmatpush1.xpose.msra.mxu0 0.0
        %1107 = vmatprep.subr.mxu0 0.0
        %1108 = vmatpush1.xpose.msra.mxu0 0.0
        %1109 = vmatprep.subr.mxu0 0.0
        %1110 = vmatpush1.xpose.msra.mxu0 0.0
        %1111 = vmatprep.subr.mxu0 0.0
        %1112 = vmatpush1.xpose.msra.mxu0 0.0
        %1113 = vmatprep.subr.mxu0 0.0
        %1114 = vmatpush1.xpose.msra.mxu0 0.0
        %1115 = vmatprep.subr.mxu0 0.0
        %1116 = vmatpush1.xpose.msra.mxu0 0.0
        %1117 = vmatprep.subr.mxu0 0.0
        %1118 = vmatpush1.xpose.msra.mxu0 0.0
        %1119 = vmatprep.subr.mxu0 0.0
        %1120 = vmatpush1.xpose.msra.mxu0 0.0
        %1121 = vmatprep.subr.mxu0 0.0
        %1122 = vmatpush1.xpose.msra.mxu0 0.0
        %1123 = vmatprep.subr.mxu0 0.0
        %1124 = vmatpush1.xpose.msra.mxu0 0.0
        %1125 = vmatprep.subr.mxu0 0.0
        %1126 = vmatpush1.xpose.msra.mxu0 0.0
        %1127 = vmatprep.subr.mxu0 0.0
        %1128 = vmatpush1.xpose.msra.mxu0 0.0
        %1129 = vmatprep.subr.mxu0 0.0
        %1130 = vmatpush1.xpose.msra.mxu0 0.0
        %1131 = vmatprep.subr.mxu0 0.0
        %1132 = vmatpush1.xpose.msra.mxu0 0.0
        %1133 = vmatprep.subr.mxu0 0.0
        %1134 = vmatpush1.xpose.msra.mxu0 0.0
        %1135 = vmatprep.subr.mxu0 0.0
        %1136 = vmatpush1.xpose.msra.mxu0 0.0
        %1137 = vmatprep.subr.mxu0 0.0
        %1138 = vmatpush1.xpose.msra.mxu0 0.0
        %1139 = vmatprep.subr.mxu0 0.0
        %1140 = vmatpush1.xpose.msra.mxu0 0.0
        %1141 = vmatprep.subr.mxu0 0.0
        %1142 = vmatpush1.xpose.msra.mxu0 0.0
        %1143 = vmatprep.subr.mxu0 0.0
        %1144 = vmatpush1.xpose.msra.mxu0 0.0
        %1145 = vmatprep.mubr.f32.mxu0 0.0
        %1146 = vmatmul.mubr.f32.gmra.mrb[0].mxu0 %v1077
        %v1147 = vpop.f32.mrb[0].mxu0
        %v1148 = vadd.f32 0.0, %v1147
        %v1149 = vpop.f32.mrb[0].mxu0
        %1150 = vdwg.mxu0
        %1151 = vrot.lane.b32.xlu0 %v405, 112
        %v1152 = vpop.permute.xlu0 %1151
        %1153 = vrot.lane.b32.xlu0 %v396, 80
        %v1154 = vpop.permute.xlu0 %1153
        %v1155 = vsel %vm409, %v1152, 0
        %v1157 = vsel %vm409, %v1154, 0
        %1159 = vmatprep.subr.mxu0 0.0
        %1160 = vmatpush1.xpose.msra.mxu0 %v1157
        %1161 = vmatprep.subr.mxu0 0.0
        %1162 = vmatpush1.xpose.msra.mxu0 0.0
        %1163 = vmatprep.subr.mxu0 0.0
        %1164 = vmatpush1.xpose.msra.mxu0 0.0
        %1165 = vmatprep.subr.mxu0 0.0
        %1166 = vmatpush1.xpose.msra.mxu0 0.0
        %1167 = vmatprep.subr.mxu0 0.0
        %1168 = vmatpush1.xpose.msra.mxu0 0.0
        %1169 = vmatprep.subr.mxu0 0.0
        %1170 = vmatpush1.xpose.msra.mxu0 0.0
        %1171 = vmatprep.subr.mxu0 0.0
        %1172 = vmatpush1.xpose.msra.mxu0 0.0
        %1173 = vmatprep.subr.mxu0 0.0
        %1174 = vmatpush1.xpose.msra.mxu0 0.0
        %1175 = vmatprep.subr.mxu0 0.0
        %1176 = vmatpush1.xpose.msra.mxu0 0.0
        %1177 = vmatprep.subr.mxu0 0.0
        %1178 = vmatpush1.xpose.msra.mxu0 0.0
        %1179 = vmatprep.subr.mxu0 0.0
        %1180 = vmatpush1.xpose.msra.mxu0 0.0
        %1181 = vmatprep.subr.mxu0 0.0
        %1182 = vmatpush1.xpose.msra.mxu0 0.0
        %1183 = vmatprep.subr.mxu0 0.0
        %1184 = vmatpush1.xpose.msra.mxu0 0.0
        %1185 = vmatprep.subr.mxu0 0.0
        %1186 = vmatpush1.xpose.msra.mxu0 0.0
        %1187 = vmatprep.subr.mxu0 0.0
        %1188 = vmatpush1.xpose.msra.mxu0 0.0
        %1189 = vmatprep.subr.mxu0 0.0
        %1190 = vmatpush1.xpose.msra.mxu0 0.0
        %1191 = vmatprep.subr.mxu0 0.0
        %1192 = vmatpush1.xpose.msra.mxu0 0.0
        %1193 = vmatprep.subr.mxu0 0.0
        %1194 = vmatpush1.xpose.msra.mxu0 0.0
        %1195 = vmatprep.subr.mxu0 0.0
        %1196 = vmatpush1.xpose.msra.mxu0 0.0
        %1197 = vmatprep.subr.mxu0 0.0
        %1198 = vmatpush1.xpose.msra.mxu0 0.0
        %1199 = vmatprep.subr.mxu0 0.0
        %1200 = vmatpush1.xpose.msra.mxu0 0.0
        %1201 = vmatprep.subr.mxu0 0.0
        %1202 = vmatpush1.xpose.msra.mxu0 0.0
        %1203 = vmatprep.subr.mxu0 0.0
        %1204 = vmatpush1.xpose.msra.mxu0 0.0
        %1205 = vmatprep.subr.mxu0 0.0
        %1206 = vmatpush1.xpose.msra.mxu0 0.0
        %1207 = vmatprep.subr.mxu0 0.0
        %1208 = vmatpush1.xpose.msra.mxu0 0.0
        %1209 = vmatprep.subr.mxu0 0.0
        %1210 = vmatpush1.xpose.msra.mxu0 0.0
        %1211 = vmatprep.subr.mxu0 0.0
        %1212 = vmatpush1.xpose.msra.mxu0 0.0
        %1213 = vmatprep.subr.mxu0 0.0
        %1214 = vmatpush1.xpose.msra.mxu0 0.0
        %1215 = vmatprep.subr.mxu0 0.0
        %1216 = vmatpush1.xpose.msra.mxu0 0.0
        %1217 = vmatprep.subr.mxu0 0.0
        %1218 = vmatpush1.xpose.msra.mxu0 0.0
        %1219 = vmatprep.subr.mxu0 0.0
        %1220 = vmatpush1.xpose.msra.mxu0 0.0
        %1221 = vmatprep.subr.mxu0 0.0
        %1222 = vmatpush1.xpose.msra.mxu0 0.0
        %1223 = vmatprep.mubr.f32.mxu0 0.0
        %1224 = vmatmul.mubr.f32.gmra.mrb[0].mxu0 %v1155
        %v1225 = vpop.f32.mrb[0].mxu0
        %v1226 = vadd.f32 0.0, %v1225
        %v1227 = vpop.f32.mrb[0].mxu0
        %1228 = vdwg.mxu0
        %v1229 = vsel %vm564, %v1148, -inf
        %v1230 = vsel %vm564, %v1226, -inf
        %v1231 = vsel %vm409, %v1229, -inf
        %1232 = vmax.xlane.f32.xlu0 %v1231
        %v1233 = vpop.xlane.xlu0 %1232
        %v1234 = vsel %vm409, %v1230, -inf
        %1235 = vmax.xlane.f32.xlu0 %v1234
        %v1236 = vpop.xlane.xlu0 %1235
        %v1237 = vsub.f32 %v1229, %v1233
        %v1238 = vsub.f32 %v1230, %v1236
        %v1239 = vmul.f32 %v1237, 1.442695
        %v1240 = vpow.pop %v1239
        %v1241 = vmul.f32 %v1238, 1.442695
        %v1242 = vpow.pop %v1241
        %v1243 = vsel %vm409, %v1240, 0.0
        %1244 = vadd.xlane.f32.xlu0 %v1243
        %v1245 = vpop.xlane.xlu0 %1244
        %v1246 = vsel %vm409, %v1242, 0.0
        %1247 = vadd.xlane.f32.xlu0 %v1246
        %v1248 = vpop.xlane.xlu0 %1247
        %v1249 = vrcp.pop %v1245
        %v1250 = vrcp.pop %v1248
        %v1251 = vmul.f32 %v1240, %v1249
        %v1252 = vmul.f32 %v1242, %v1250
        %1253 = vrot.lane.b32.xlu0 %v393, 48
        %v1254 = vpop.permute.xlu0 %1253
        %v1257 = vsel %vm409, %v1251, 0
        %1259 = vmatprep.subr.mxu0 0.0
        %1260 = vmatpush1.msra.mxu0 %v1254
        %1261 = vmatprep.subr.mxu0 0.0
        %1262 = vmatpush1.msra.mxu0 0.0
        %1263 = vmatprep.subr.mxu0 0.0
        %1264 = vmatpush1.msra.mxu0 0.0
        %1265 = vmatprep.subr.mxu0 0.0
        %1266 = vmatpush1.msra.mxu0 0.0
        %1267 = vmatprep.subr.mxu0 0.0
        %1268 = vmatpush1.msra.mxu0 0.0
        %1269 = vmatprep.subr.mxu0 0.0
        %1270 = vmatpush1.msra.mxu0 0.0
        %1271 = vmatprep.subr.mxu0 0.0
        %1272 = vmatpush1.msra.mxu0 0.0
        %1273 = vmatprep.subr.mxu0 0.0
        %1274 = vmatpush1.msra.mxu0 0.0
        %1275 = vmatprep.subr.mxu0 0.0
        %1276 = vmatpush1.msra.mxu0 0.0
        %1277 = vmatprep.subr.mxu0 0.0
        %1278 = vmatpush1.msra.mxu0 0.0
        %1279 = vmatprep.subr.mxu0 0.0
        %1280 = vmatpush1.msra.mxu0 0.0
        %1281 = vmatprep.subr.mxu0 0.0
        %1282 = vmatpush1.msra.mxu0 0.0
        %1283 = vmatprep.subr.mxu0 0.0
        %1284 = vmatpush1.msra.mxu0 0.0
        %1285 = vmatprep.subr.mxu0 0.0
        %1286 = vmatpush1.msra.mxu0 0.0
        %1287 = vmatprep.subr.mxu0 0.0
        %1288 = vmatpush1.msra.mxu0 0.0
        %1289 = vmatprep.subr.mxu0 0.0
        %1290 = vmatpush1.msra.mxu0 0.0
        %1291 = vmatprep.subr.mxu0 0.0
        %1292 = vmatpush1.msra.mxu0 0.0
        %1293 = vmatprep.subr.mxu0 0.0
        %1294 = vmatpush1.msra.mxu0 0.0
        %1295 = vmatprep.subr.mxu0 0.0
        %1296 = vmatpush1.msra.mxu0 0.0
        %1297 = vmatprep.subr.mxu0 0.0
        %1298 = vmatpush1.msra.mxu0 0.0
        %1299 = vmatprep.subr.mxu0 0.0
        %1300 = vmatpush1.msra.mxu0 0.0
        %1301 = vmatprep.subr.mxu0 0.0
        %1302 = vmatpush1.msra.mxu0 0.0
        %1303 = vmatprep.subr.mxu0 0.0
        %1304 = vmatpush1.msra.mxu0 0.0
        %1305 = vmatprep.subr.mxu0 0.0
        %1306 = vmatpush1.msra.mxu0 0.0
        %1307 = vmatprep.subr.mxu0 0.0
        %1308 = vmatpush1.msra.mxu0 0.0
        %1309 = vmatprep.subr.mxu0 0.0
        %1310 = vmatpush1.msra.mxu0 0.0
        %1311 = vmatprep.subr.mxu0 0.0
        %1312 = vmatpush1.msra.mxu0 0.0
        %1313 = vmatprep.subr.mxu0 0.0
        %1314 = vmatpush1.msra.mxu0 0.0
        %1315 = vmatprep.subr.mxu0 0.0
        %1316 = vmatpush1.msra.mxu0 0.0
        %1317 = vmatprep.subr.mxu0 0.0
        %1318 = vmatpush1.msra.mxu0 0.0
        %1319 = vmatprep.subr.mxu0 0.0
        %1320 = vmatpush1.msra.mxu0 0.0
        %1321 = vmatprep.subr.mxu0 0.0
        %1322 = vmatpush1.msra.mxu0 0.0
        %1323 = vmatprep.mubr.f32.mxu0 0.0
        %1324 = vmatmul.mubr.f32.gmra.mrb[0].mxu0 %v1257
        %v1325 = vpop.f32.mrb[0].mxu0
        %v1326 = vadd.f32 0.0, %v1325
        %v1327 = vpop.f32.mrb[0].mxu0
        %1328 = vdwg.mxu0
        %1329 = vrot.lane.b32.xlu0 %v396, 48
        %v1330 = vpop.permute.xlu0 %1329
        %v1333 = vsel %vm409, %v1252, 0
        %1335 = vmatprep.subr.mxu0 0.0
        %1336 = vmatpush1.msra.mxu0 %v1330
        %1337 = vmatprep.subr.mxu0 0.0
        %1338 = vmatpush1.msra.mxu0 0.0
        %1339 = vmatprep.subr.mxu0 0.0
        %1340 = vmatpush1.msra.mxu0 0.0
        %1341 = vmatprep.subr.mxu0 0.0
        %1342 = vmatpush1.msra.mxu0 0.0
        %1343 = vmatprep.subr.mxu0 0.0
        %1344 = vmatpush1.msra.mxu0 0.0
        %1345 = vmatprep.subr.mxu0 0.0
        %1346 = vmatpush1.msra.mxu0 0.0
        %1347 = vmatprep.subr.mxu0 0.0
        %1348 = vmatpush1.msra.mxu0 0.0
        %1349 = vmatprep.subr.mxu0 0.0
        %1350 = vmatpush1.msra.mxu0 0.0
        %1351 = vmatprep.subr.mxu0 0.0
        %1352 = vmatpush1.msra.mxu0 0.0
        %1353 = vmatprep.subr.mxu0 0.0
        %1354 = vmatpush1.msra.mxu0 0.0
        %1355 = vmatprep.subr.mxu0 0.0
        %1356 = vmatpush1.msra.mxu0 0.0
        %1357 = vmatprep.subr.mxu0 0.0
        %1358 = vmatpush1.msra.mxu0 0.0
        %1359 = vmatprep.subr.mxu0 0.0
        %1360 = vmatpush1.msra.mxu0 0.0
        %1361 = vmatprep.subr.mxu0 0.0
        %1362 = vmatpush1.msra.mxu0 0.0
        %1363 = vmatprep.subr.mxu0 0.0
        %1364 = vmatpush1.msra.mxu0 0.0
        %1365 = vmatprep.subr.mxu0 0.0
        %1366 = vmatpush1.msra.mxu0 0.0
        %1367 = vmatprep.subr.mxu0 0.0
        %1368 = vmatpush1.msra.mxu0 0.0
        %1369 = vmatprep.subr.mxu0 0.0
        %1370 = vmatpush1.msra.mxu0 0.0
        %1371 = vmatprep.subr.mxu0 0.0
        %1372 = vmatpush1.msra.mxu0 0.0
        %1373 = vmatprep.subr.mxu0 0.0
        %1374 = vmatpush1.msra.mxu0 0.0
        %1375 = vmatprep.subr.mxu0 0.0
        %1376 = vmatpush1.msra.mxu0 0.0
        %1377 = vmatprep.subr.mxu0 0.0
        %1378 = vmatpush1.msra.mxu0 0.0
        %1379 = vmatprep.subr.mxu0 0.0
        %1380 = vmatpush1.msra.mxu0 0.0
        %1381 = vmatprep.subr.mxu0 0.0
        %1382 = vmatpush1.msra.mxu0 0.0
        %1383 = vmatprep.subr.mxu0 0.0
        %1384 = vmatpush1.msra.mxu0 0.0
        %1385 = vmatprep.subr.mxu0 0.0
        %1386 = vmatpush1.msra.mxu0 0.0
        %1387 = vmatprep.subr.mxu0 0.0
        %1388 = vmatpush1.msra.mxu0 0.0
        %1389 = vmatprep.subr.mxu0 0.0
        %1390 = vmatpush1.msra.mxu0 0.0
        %1391 = vmatprep.subr.mxu0 0.0
        %1392 = vmatpush1.msra.mxu0 0.0
        %1393 = vmatprep.subr.mxu0 0.0
        %1394 = vmatpush1.msra.mxu0 0.0
        %1395 = vmatprep.subr.mxu0 0.0
        %1396 = vmatpush1.msra.mxu0 0.0
        %1397 = vmatprep.subr.mxu0 0.0
        %1398 = vmatpush1.msra.mxu0 0.0
        %1399 = vmatprep.mubr.f32.mxu0 0.0
        %1400 = vmatmul.mubr.f32.gmra.mrb[0].mxu0 %v1333
        %v1401 = vpop.f32.mrb[0].mxu0
        %v1402 = vadd.f32 0.0, %v1401
        %v1403 = vpop.f32.mrb[0].mxu0
        %1404 = vdwg.mxu0
        %1405 = vrot.lane.b32.xlu0 %v404, 104
        %v1406 = vpop.permute.xlu0 %1405
        %1407 = vrot.lane.b32.xlu0 %v393, 72
        %v1408 = vpop.permute.xlu0 %1407
        %v1409 = vsel %vm409, %v1406, 0
        %v1411 = vsel %vm409, %v1408, 0
        %1413 = vmatprep.subr.mxu0 0.0
        %1414 = vmatpush1.xpose.msra.mxu0 %v1411
        %1415 = vmatprep.subr.mxu0 0.0
        %1416 = vmatpush1.xpose.msra.mxu0 0.0
        %1417 = vmatprep.subr.mxu0 0.0
        %1418 = vmatpush1.xpose.msra.mxu0 0.0
        %1419 = vmatprep.subr.mxu0 0.0
        %1420 = vmatpush1.xpose.msra.mxu0 0.0
        %1421 = vmatprep.subr.mxu0 0.0
        %1422 = vmatpush1.xpose.msra.mxu0 0.0
        %1423 = vmatprep.subr.mxu0 0.0
        %1424 = vmatpush1.xpose.msra.mxu0 0.0
        %1425 = vmatprep.subr.mxu0 0.0
        %1426 = vmatpush1.xpose.msra.mxu0 0.0
        %1427 = vmatprep.subr.mxu0 0.0
        %1428 = vmatpush1.xpose.msra.mxu0 0.0
        %1429 = vmatprep.subr.mxu0 0.0
        %1430 = vmatpush1.xpose.msra.mxu0 0.0
        %1431 = vmatprep.subr.mxu0 0.0
        %1432 = vmatpush1.xpose.msra.mxu0 0.0
        %1433 = vmatprep.subr.mxu0 0.0
        %1434 = vmatpush1.xpose.msra.mxu0 0.0
        %1435 = vmatprep.subr.mxu0 0.0
        %1436 = vmatpush1.xpose.msra.mxu0 0.0
        %1437 = vmatprep.subr.mxu0 0.0
        %1438 = vmatpush1.xpose.msra.mxu0 0.0
        %1439 = vmatprep.subr.mxu0 0.0
        %1440 = vmatpush1.xpose.msra.mxu0 0.0
        %1441 = vmatprep.subr.mxu0 0.0
        %1442 = vmatpush1.xpose.msra.mxu0 0.0
        %1443 = vmatprep.subr.mxu0 0.0
        %1444 = vmatpush1.xpose.msra.mxu0 0.0
        %1445 = vmatprep.subr.mxu0 0.0
        %1446 = vmatpush1.xpose.msra.mxu0 0.0
        %1447 = vmatprep.subr.mxu0 0.0
        %1448 = vmatpush1.xpose.msra.mxu0 0.0
        %1449 = vmatprep.subr.mxu0 0.0
        %1450 = vmatpush1.xpose.msra.mxu0 0.0
        %1451 = vmatprep.subr.mxu0 0.0
        %1452 = vmatpush1.xpose.msra.mxu0 0.0
        %1453 = vmatprep.subr.mxu0 0.0
        %1454 = vmatpush1.xpose.msra.mxu0 0.0
        %1455 = vmatprep.subr.mxu0 0.0
        %1456 = vmatpush1.xpose.msra.mxu0 0.0
        %1457 = vmatprep.subr.mxu0 0.0
        %1458 = vmatpush1.xpose.msra.mxu0 0.0
        %1459 = vmatprep.subr.mxu0 0.0
        %1460 = vmatpush1.xpose.msra.mxu0 0.0
        %1461 = vmatprep.subr.mxu0 0.0
        %1462 = vmatpush1.xpose.msra.mxu0 0.0
        %1463 = vmatprep.subr.mxu0 0.0
        %1464 = vmatpush1.xpose.msra.mxu0 0.0
        %1465 = vmatprep.subr.mxu0 0.0
        %1466 = vmatpush1.xpose.msra.mxu0 0.0
        %1467 = vmatprep.subr.mxu0 0.0
        %1468 = vmatpush1.xpose.msra.mxu0 0.0
        %1469 = vmatprep.subr.mxu0 0.0
        %1470 = vmatpush1.xpose.msra.mxu0 0.0
        %1471 = vmatprep.subr.mxu0 0.0
        %1472 = vmatpush1.xpose.msra.mxu0 0.0
        %1473 = vmatprep.subr.mxu0 0.0
        %1474 = vmatpush1.xpose.msra.mxu0 0.0
        %1475 = vmatprep.subr.mxu0 0.0
        %1476 = vmatpush1.xpose.msra.mxu0 0.0
        %1477 = vmatprep.mubr.f32.mxu0 0.0
        %1478 = vmatmul.mubr.f32.gmra.mrb[0].mxu0 %v1409
        %v1479 = vpop.f32.mrb[0].mxu0
        %v1480 = vadd.f32 0.0, %v1479
        %v1481 = vpop.f32.mrb[0].mxu0
        %1482 = vdwg.mxu0
        %1483 = vrot.lane.b32.xlu0 %v405, 104
        %v1484 = vpop.permute.xlu0 %1483
        %1485 = vrot.lane.b32.xlu0 %v396, 72
        %v1486 = vpop.permute.xlu0 %1485
        %v1487 = vsel %vm409, %v1484, 0
        %v1489 = vsel %vm409, %v1486, 0
        %1491 = vmatprep.subr.mxu0 0.0
        %1492 = vmatpush1.xpose.msra.mxu0 %v1489
        %1493 = vmatprep.subr.mxu0 0.0
        %1494 = vmatpush1.xpose.msra.mxu0 0.0
        %1495 = vmatprep.subr.mxu0 0.0
        %1496 = vmatpush1.xpose.msra.mxu0 0.0
        %1497 = vmatprep.subr.mxu0 0.0
        %1498 = vmatpush1.xpose.msra.mxu0 0.0
        %1499 = vmatprep.subr.mxu0 0.0
        %1500 = vmatpush1.xpose.msra.mxu0 0.0
        %1501 = vmatprep.subr.mxu0 0.0
        %1502 = vmatpush1.xpose.msra.mxu0 0.0
        %1503 = vmatprep.subr.mxu0 0.0
        %1504 = vmatpush1.xpose.msra.mxu0 0.0
        %1505 = vmatprep.subr.mxu0 0.0
        %1506 = vmatpush1.xpose.msra.mxu0 0.0
        %1507 = vmatprep.subr.mxu0 0.0
        %1508 = vmatpush1.xpose.msra.mxu0 0.0
        %1509 = vmatprep.subr.mxu0 0.0
        %1510 = vmatpush1.xpose.msra.mxu0 0.0
        %1511 = vmatprep.subr.mxu0 0.0
        %1512 = vmatpush1.xpose.msra.mxu0 0.0
        %1513 = vmatprep.subr.mxu0 0.0
        %1514 = vmatpush1.xpose.msra.mxu0 0.0
        %1515 = vmatprep.subr.mxu0 0.0
        %1516 = vmatpush1.xpose.msra.mxu0 0.0
        %1517 = vmatprep.subr.mxu0 0.0
        %1518 = vmatpush1.xpose.msra.mxu0 0.0
        %1519 = vmatprep.subr.mxu0 0.0
        %1520 = vmatpush1.xpose.msra.mxu0 0.0
        %1521 = vmatprep.subr.mxu0 0.0
        %1522 = vmatpush1.xpose.msra.mxu0 0.0
        %1523 = vmatprep.subr.mxu0 0.0
        %1524 = vmatpush1.xpose.msra.mxu0 0.0
        %1525 = vmatprep.subr.mxu0 0.0
        %1526 = vmatpush1.xpose.msra.mxu0 0.0
        %1527 = vmatprep.subr.mxu0 0.0
        %1528 = vmatpush1.xpose.msra.mxu0 0.0
        %1529 = vmatprep.subr.mxu0 0.0
        %1530 = vmatpush1.xpose.msra.mxu0 0.0
        %1531 = vmatprep.subr.mxu0 0.0
        %1532 = vmatpush1.xpose.msra.mxu0 0.0
        %1533 = vmatprep.subr.mxu0 0.0
        %1534 = vmatpush1.xpose.msra.mxu0 0.0
        %1535 = vmatprep.subr.mxu0 0.0
        %1536 = vmatpush1.xpose.msra.mxu0 0.0
        %1537 = vmatprep.subr.mxu0 0.0
        %1538 = vmatpush1.xpose.msra.mxu0 0.0
        %1539 = vmatprep.subr.mxu0 0.0
        %1540 = vmatpush1.xpose.msra.mxu0 0.0
        %1541 = vmatprep.subr.mxu0 0.0
        %1542 = vmatpush1.xpose.msra.mxu0 0.0
        %1543 = vmatprep.subr.mxu0 0.0
        %1544 = vmatpush1.xpose.msra.mxu0 0.0
        %1545 = vmatprep.subr.mxu0 0.0
        %1546 = vmatpush1.xpose.msra.mxu0 0.0
        %1547 = vmatprep.subr.mxu0 0.0
        %1548 = vmatpush1.xpose.msra.mxu0 0.0
        %1549 = vmatprep.subr.mxu0 0.0
        %1550 = vmatpush1.xpose.msra.mxu0 0.0
        %1551 = vmatprep.subr.mxu0 0.0
        %1552 = vmatpush1.xpose.msra.mxu0 0.0
        %1553 = vmatprep.subr.mxu0 0.0
        %1554 = vmatpush1.xpose.msra.mxu0 0.0
        %1555 = vmatprep.mubr.f32.mxu0 0.0
        %1556 = vmatmul.mubr.f32.gmra.mrb[0].mxu0 %v1487
        %v1557 = vpop.f32.mrb[0].mxu0
        %v1558 = vadd.f32 0.0, %v1557
        %v1559 = vpop.f32.mrb[0].mxu0
        %1560 = vdwg.mxu0
        %v1561 = vsel %vm564, %v1480, -inf
        %v1562 = vsel %vm564, %v1558, -inf
        %v1563 = vsel %vm409, %v1561, -inf
        %1564 = vmax.xlane.f32.xlu0 %v1563
        %v1565 = vpop.xlane.xlu0 %1564
        %v1566 = vsel %vm409, %v1562, -inf
        %1567 = vmax.xlane.f32.xlu0 %v1566
        %v1568 = vpop.xlane.xlu0 %1567
        %v1569 = vsub.f32 %v1561, %v1565
        %v1570 = vsub.f32 %v1562, %v1568
        %v1571 = vmul.f32 %v1569, 1.442695
        %v1572 = vpow.pop %v1571
        %v1573 = vmul.f32 %v1570, 1.442695
        %v1574 = vpow.pop %v1573
        %v1575 = vsel %vm409, %v1572, 0.0
        %1576 = vadd.xlane.f32.xlu0 %v1575
        %v1577 = vpop.xlane.xlu0 %1576
        %v1578 = vsel %vm409, %v1574, 0.0
        %1579 = vadd.xlane.f32.xlu0 %v1578
        %v1580 = vpop.xlane.xlu0 %1579
        %v1581 = vrcp.pop %v1577
        %v1582 = vrcp.pop %v1580
        %v1583 = vmul.f32 %v1572, %v1581
        %v1584 = vmul.f32 %v1574, %v1582
        %1585 = vrot.lane.b32.xlu0 %v393, 40
        %v1586 = vpop.permute.xlu0 %1585
        %v1589 = vsel %vm409, %v1583, 0
        %1591 = vmatprep.subr.mxu0 0.0
        %1592 = vmatpush1.msra.mxu0 %v1586
        %1593 = vmatprep.subr.mxu0 0.0
        %1594 = vmatpush1.msra.mxu0 0.0
        %1595 = vmatprep.subr.mxu0 0.0
        %1596 = vmatpush1.msra.mxu0 0.0
        %1597 = vmatprep.subr.mxu0 0.0
        %1598 = vmatpush1.msra.mxu0 0.0
        %1599 = vmatprep.subr.mxu0 0.0
        %1600 = vmatpush1.msra.mxu0 0.0
        %1601 = vmatprep.subr.mxu0 0.0
        %1602 = vmatpush1.msra.mxu0 0.0
        %1603 = vmatprep.subr.mxu0 0.0
        %1604 = vmatpush1.msra.mxu0 0.0
        %1605 = vmatprep.subr.mxu0 0.0
        %1606 = vmatpush1.msra.mxu0 0.0
        %1607 = vmatprep.subr.mxu0 0.0
        %1608 = vmatpush1.msra.mxu0 0.0
        %1609 = vmatprep.subr.mxu0 0.0
        %1610 = vmatpush1.msra.mxu0 0.0
        %1611 = vmatprep.subr.mxu0 0.0
        %1612 = vmatpush1.msra.mxu0 0.0
        %1613 = vmatprep.subr.mxu0 0.0
        %1614 = vmatpush1.msra.mxu0 0.0
        %1615 = vmatprep.subr.mxu0 0.0
        %1616 = vmatpush1.msra.mxu0 0.0
        %1617 = vmatprep.subr.mxu0 0.0
        %1618 = vmatpush1.msra.mxu0 0.0
        %1619 = vmatprep.subr.mxu0 0.0
        %1620 = vmatpush1.msra.mxu0 0.0
        %1621 = vmatprep.subr.mxu0 0.0
        %1622 = vmatpush1.msra.mxu0 0.0
        %1623 = vmatprep.subr.mxu0 0.0
        %1624 = vmatpush1.msra.mxu0 0.0
        %1625 = vmatprep.subr.mxu0 0.0
        %1626 = vmatpush1.msra.mxu0 0.0
        %1627 = vmatprep.subr.mxu0 0.0
        %1628 = vmatpush1.msra.mxu0 0.0
        %1629 = vmatprep.subr.mxu0 0.0
        %1630 = vmatpush1.msra.mxu0 0.0
        %1631 = vmatprep.subr.mxu0 0.0
        %1632 = vmatpush1.msra.mxu0 0.0
        %1633 = vmatprep.subr.mxu0 0.0
        %1634 = vmatpush1.msra.mxu0 0.0
        %1635 = vmatprep.subr.mxu0 0.0
        %1636 = vmatpush1.msra.mxu0 0.0
        %1637 = vmatprep.subr.mxu0 0.0
        %1638 = vmatpush1.msra.mxu0 0.0
        %1639 = vmatprep.subr.mxu0 0.0
        %1640 = vmatpush1.msra.mxu0 0.0
        %1641 = vmatprep.subr.mxu0 0.0
        %1642 = vmatpush1.msra.mxu0 0.0
        %1643 = vmatprep.subr.mxu0 0.0
        %1644 = vmatpush1.msra.mxu0 0.0
        %1645 = vmatprep.subr.mxu0 0.0
        %1646 = vmatpush1.msra.mxu0 0.0
        %1647 = vmatprep.subr.mxu0 0.0
        %1648 = vmatpush1.msra.mxu0 0.0
        %1649 = vmatprep.subr.mxu0 0.0
        %1650 = vmatpush1.msra.mxu0 0.0
        %1651 = vmatprep.subr.mxu0 0.0
        %1652 = vmatpush1.msra.mxu0 0.0
        %1653 = vmatprep.subr.mxu0 0.0
        %1654 = vmatpush1.msra.mxu0 0.0
        %1655 = vmatprep.mubr.f32.mxu0 0.0
        %1656 = vmatmul.mubr.f32.gmra.mrb[0].mxu0 %v1589
        %v1657 = vpop.f32.mrb[0].mxu0
        %v1658 = vadd.f32 0.0, %v1657
        %v1659 = vpop.f32.mrb[0].mxu0
        %1660 = vdwg.mxu0
        %1661 = vrot.lane.b32.xlu0 %v396, 40
        %v1662 = vpop.permute.xlu0 %1661
        %v1665 = vsel %vm409, %v1584, 0
        %1667 = vmatprep.subr.mxu0 0.0
        %1668 = vmatpush1.msra.mxu0 %v1662
        %1669 = vmatprep.subr.mxu0 0.0
        %1670 = vmatpush1.msra.mxu0 0.0
        %1671 = vmatprep.subr.mxu0 0.0
        %1672 = vmatpush1.msra.mxu0 0.0
        %1673 = vmatprep.subr.mxu0 0.0
        %1674 = vmatpush1.msra.mxu0 0.0
        %1675 = vmatprep.subr.mxu0 0.0
        %1676 = vmatpush1.msra.mxu0 0.0
        %1677 = vmatprep.subr.mxu0 0.0
        %1678 = vmatpush1.msra.mxu0 0.0
        %1679 = vmatprep.subr.mxu0 0.0
        %1680 = vmatpush1.msra.mxu0 0.0
        %1681 = vmatprep.subr.mxu0 0.0
        %1682 = vmatpush1.msra.mxu0 0.0
        %1683 = vmatprep.subr.mxu0 0.0
        %1684 = vmatpush1.msra.mxu0 0.0
        %1685 = vmatprep.subr.mxu0 0.0
        %1686 = vmatpush1.msra.mxu0 0.0
        %1687 = vmatprep.subr.mxu0 0.0
        %1688 = vmatpush1.msra.mxu0 0.0
        %1689 = vmatprep.subr.mxu0 0.0
        %1690 = vmatpush1.msra.mxu0 0.0
        %1691 = vmatprep.subr.mxu0 0.0
        %1692 = vmatpush1.msra.mxu0 0.0
        %1693 = vmatprep.subr.mxu0 0.0
        %1694 = vmatpush1.msra.mxu0 0.0
        %1695 = vmatprep.subr.mxu0 0.0
        %1696 = vmatpush1.msra.mxu0 0.0
        %1697 = vmatprep.subr.mxu0 0.0
        %1698 = vmatpush1.msra.mxu0 0.0
        %1699 = vmatprep.subr.mxu0 0.0
        %1700 = vmatpush1.msra.mxu0 0.0
        %1701 = vmatprep.subr.mxu0 0.0
        %1702 = vmatpush1.msra.mxu0 0.0
        %1703 = vmatprep.subr.mxu0 0.0
        %1704 = vmatpush1.msra.mxu0 0.0
        %1705 = vmatprep.subr.mxu0 0.0
        %1706 = vmatpush1.msra.mxu0 0.0
        %1707 = vmatprep.subr.mxu0 0.0
        %1708 = vmatpush1.msra.mxu0 0.0
        %1709 = vmatprep.subr.mxu0 0.0
        %1710 = vmatpush1.msra.mxu0 0.0
        %1711 = vmatprep.subr.mxu0 0.0
        %1712 = vmatpush1.msra.mxu0 0.0
        %1713 = vmatprep.subr.mxu0 0.0
        %1714 = vmatpush1.msra.mxu0 0.0
        %1715 = vmatprep.subr.mxu0 0.0
        %1716 = vmatpush1.msra.mxu0 0.0
        %1717 = vmatprep.subr.mxu0 0.0
        %1718 = vmatpush1.msra.mxu0 0.0
        %1719 = vmatprep.subr.mxu0 0.0
        %1720 = vmatpush1.msra.mxu0 0.0
        %1721 = vmatprep.subr.mxu0 0.0
        %1722 = vmatpush1.msra.mxu0 0.0
        %1723 = vmatprep.subr.mxu0 0.0
        %1724 = vmatpush1.msra.mxu0 0.0
        %1725 = vmatprep.subr.mxu0 0.0
        %1726 = vmatpush1.msra.mxu0 0.0
        %1727 = vmatprep.subr.mxu0 0.0
        %1728 = vmatpush1.msra.mxu0 0.0
        %1729 = vmatprep.subr.mxu0 0.0
        %1730 = vmatpush1.msra.mxu0 0.0
        %1731 = vmatprep.mubr.f32.mxu0 0.0
        %1732 = vmatmul.mubr.f32.gmra.mrb[0].mxu0 %v1665
        %v1733 = vpop.f32.mrb[0].mxu0
        %v1734 = vadd.f32 0.0, %v1733
        %v1735 = vpop.f32.mrb[0].mxu0
        %1736 = vdwg.mxu0
        %1739 = vrot.lane.b32.xlu0 %v994, 8
        %v1740 = vpop.permute.xlu0 %1739
        %1741 = vrot.lane.b32.xlu0 %v1070, 8
        %v1742 = vpop.permute.xlu0 %1741
        %1747 = vrot.lane.b32.xlu0 %v1326, 16
        %v1748 = vpop.permute.xlu0 %1747
        %1749 = vrot.lane.b32.xlu0 %v1402, 16
        %v1750 = vpop.permute.xlu0 %1749
        %1755 = vrot.lane.b32.xlu0 %v1658, 24
        %v1756 = vpop.permute.xlu0 %1755
        %1757 = vrot.lane.b32.xlu0 %v1734, 24
        %v1758 = vpop.permute.xlu0 %1757
        %v1761 = vsel %vm409, %v662, %v1740
        %v1762 = vsel %vm409, %v738, %v1742
        %vm1763 = vcmask 130048
        %v1764 = vsel %vm1763, %v1761, %v1748
        %v1765 = vsel %vm1763, %v1762, %v1750
        %vm1766 = vcmask 195584
        %v1767 = vsel %vm1766, %v1764, %v1756
        %v1768 = vsel %vm1766, %v1765, %v1758
        %v1769 = vadd.f32 %v334, %v1767
        %v1770 = vadd.f32 %v335, %v1768
        %v1771 = vsel %vm354, %v1769, 0.0
        %1772 = vadd.xlane.f32.xlu0 %v1771
        %v1773 = vpop.xlane.xlu0 %1772
        %v1774 = vsel %vm354, %v1770, 0.0
        %1775 = vadd.xlane.f32.xlu0 %v1774
        %v1776 = vpop.xlane.xlu0 %1775
        %v1777 = vrcp.pop 32.0
        %v1778 = vmul.f32 %v1773, %v1777
        %v1779 = vmul.f32 %v1776, %v1777
        %v1780 = vsub.f32 %v1769, %v1778
        %v1781 = vsub.f32 %v1770, %v1779
        %v1782 = vmul.f32 %v1780, %v1780
        %v1783 = vmul.f32 %v1781, %v1781
        %v1784 = vsel %vm354, %v1782, 0.0
        %1785 = vadd.xlane.f32.xlu0 %v1784
        %v1786 = vpop.xlane.xlu0 %1785
        %v1787 = vsel %vm354, %v1783, 0.0
        %1788 = vadd.xlane.f32.xlu0 %v1787
        %v1789 = vpop.xlane.xlu0 %1788
        %v1790 = vmul.f32 %v1786, %v1777
        %v1791 = vmul.f32 %v1789, %v1777
        %v1792 = vadd.f32 %v1790, 1e-05
        %v1793 = vadd.f32 %v1791, 1e-05
        %v1794 = vrsqrt.pop %v1792
        %v1795 = vrsqrt.pop %v1793
        %v1796 = vmul.f32 %v1780, %v1794
        %v1797 = vmul.f32 %v1781, %v1795
        %v1798 = vlaneseq
        %v1799 = vshrl.u32 %v1798, 7
        %v1800 = vsub.s32 0, %v1799
        %v1801 = vrot.slane %v336, %v1800
        %v1802 = vmul.f32 %v1796, %v1801
        %v1803 = vmul.f32 %v1797, %v1801
        %v1804 = vlaneseq
        %v1805 = vshrl.u32 %v1804, 7
        %v1806 = vsub.s32 1, %v1805
        %v1807 = vrot.slane %v336, %v1806
        %v1808 = vadd.f32 %v1802, %v1807
        %v1809 = vadd.f32 %v1803, %v1807
        %v1810 = vpack.c.bf16 %v1809, %v1808
        %v1811 = vld [vmem:[%s312] sm:$0xf]
        %v1812 = vld [vmem:[%s312 + $0x4] sm:$0xf]
        %v1813 = vld [vmem:[%s312 + $0x8] sm:$0xf]
        %v1814 = vld [vmem:[%s312 + $0xc] sm:$0xf]
        %v1815 = vlaneseq
        %v1816 = vshrl.u32 %v1815, 7
        %v1817 = vsub.s32 5, %v1816
        %v1818 = vrot.slane %v336, %v1817
        %v1823 = vunpack.c.l.b16 %v1811
        %v1824 = vunpack.c.l.b16 %v1812
        %v1825 = vunpack.c.l.b16 %v1813
        %v1826 = vunpack.c.l.b16 %v1814
        %v1827 = vpack.c.b16 %v1824, %v1823
        %v1828 = vpack.c.b16 %v1826, %v1825
        %v1832 = vsel %vm354, %v1810, 0
        %1834 = vmatprep.subr.bf16.mxu0 0
        %1835 = vmatpush1.bf16.msra.mxu0 %v1827
        %1836 = vmatprep.subr.bf16.mxu0 0
        %1837 = vmatpush1.bf16.msra.mxu0 %v1828
        %1838 = vmatprep.subr.bf16.mxu0 0
        %1839 = vmatpush1.bf16.msra.mxu0 0
        %1840 = vmatprep.subr.bf16.mxu0 0
        %1841 = vmatpush1.bf16.msra.mxu0 0
        %1842 = vmatprep.subr.bf16.mxu0 0
        %1843 = vmatpush1.bf16.msra.mxu0 0
        %1844 = vmatprep.subr.bf16.mxu0 0
        %1845 = vmatpush1.bf16.msra.mxu0 0
        %1846 = vmatprep.subr.bf16.mxu0 0
        %1847 = vmatpush1.bf16.msra.mxu0 0
        %1848 = vmatprep.subr.bf16.mxu0 0
        %1849 = vmatpush1.bf16.msra.mxu0 0
        %1850 = vmatprep.subr.bf16.mxu0 0
        %1851 = vmatpush1.bf16.msra.mxu0 0
        %1852 = vmatprep.subr.bf16.mxu0 0
        %1853 = vmatpush1.bf16.msra.mxu0 0
        %1854 = vmatprep.subr.bf16.mxu0 0
        %1855 = vmatpush1.bf16.msra.mxu0 0
        %1856 = vmatprep.subr.bf16.mxu0 0
        %1857 = vmatpush1.bf16.msra.mxu0 0
        %1858 = vmatprep.subr.bf16.mxu0 0
        %1859 = vmatpush1.bf16.msra.mxu0 0
        %1860 = vmatprep.subr.bf16.mxu0 0
        %1861 = vmatpush1.bf16.msra.mxu0 0
        %1862 = vmatprep.subr.bf16.mxu0 0
        %1863 = vmatpush1.bf16.msra.mxu0 0
        %1864 = vmatprep.subr.bf16.mxu0 0
        %1865 = vmatpush1.bf16.msra.mxu0 0
        %1866 = vmatprep.mubr.bf16.mxu0 0
        %1867 = vmatmul.mubr.bf16.gmra.mrb[0].mxu0 %v1832
        %v1868 = vpop.f32.mrb[0].mxu0
        %v1869 = vadd.f32 %v1818, %v1868
        %v1870 = vpop.f32.mrb[0].mxu0
        %v1871 = vpop.f32.mrb[0].mxu0
        %v1872 = vadd.f32 %v1818, %v1871
        %v1873 = vpop.f32.mrb[0].mxu0
        %1874 = vdwg.mxu0
        %v1875 = vmax.f32 %v1869, 0.0
        %v1876 = vmax.f32 %v1872, 0.0
        %v1877 = vpack.c.bf16 %v1876, %v1875
        %v1878 = vld [vmem:[%s317] sm:$0xf]
        %v1879 = vld [vmem:[%s317 + $0x4] sm:$0xf]
        %v1880 = vld [vmem:[%s317 + $0x8] sm:$0xf]
        %v1881 = vld [vmem:[%s317 + $0xc] sm:$0xf]
        %v1882 = vld [vmem:[%s317 + $0x10] sm:$0xf]
        %v1883 = vld [vmem:[%s317 + $0x14] sm:$0xf]
        %v1884 = vld [vmem:[%s317 + $0x18] sm:$0xf]
        %v1885 = vld [vmem:[%s317 + $0x1c] sm:$0xf]
        %v1886 = vld [vmem:[%s317 + $0x20] sm:$0xf]
        %v1887 = vld [vmem:[%s317 + $0x24] sm:$0xf]
        %v1888 = vld [vmem:[%s317 + $0x28] sm:$0xf]
        %v1889 = vld [vmem:[%s317 + $0x2c] sm:$0xf]
        %v1890 = vld [vmem:[%s317 + $0x30] sm:$0xf]
        %v1891 = vld [vmem:[%s317 + $0x34] sm:$0xf]
        %v1892 = vld [vmem:[%s317 + $0x38] sm:$0xf]
        %v1893 = vld [vmem:[%s317 + $0x3c] sm:$0xf]
        %v1894 = vlaneseq
        %v1895 = vshrl.u32 %v1894, 7
        %v1896 = vsub.s32 4, %v1895
        %v1897 = vrot.slane %v336, %v1896
        %v1914 = vunpack.c.l.b16 %v1878
        %v1915 = vunpack.c.l.b16 %v1879
        %v1916 = vunpack.c.l.b16 %v1880
        %v1917 = vunpack.c.l.b16 %v1881
        %v1918 = vunpack.c.l.b16 %v1882
        %v1919 = vunpack.c.l.b16 %v1883
        %v1920 = vunpack.c.l.b16 %v1884
        %v1921 = vunpack.c.l.b16 %v1885
        %v1922 = vunpack.c.l.b16 %v1886
        %v1923 = vunpack.c.l.b16 %v1887
        %v1924 = vunpack.c.l.b16 %v1888
        %v1925 = vunpack.c.l.b16 %v1889
        %v1926 = vunpack.c.l.b16 %v1890
        %v1927 = vunpack.c.l.b16 %v1891
        %v1928 = vunpack.c.l.b16 %v1892
        %v1929 = vunpack.c.l.b16 %v1893
        %v1930 = vpack.c.b16 %v1915, %v1914
        %v1931 = vpack.c.b16 %v1917, %v1916
        %v1932 = vpack.c.b16 %v1919, %v1918
        %v1933 = vpack.c.b16 %v1921, %v1920
        %v1934 = vpack.c.b16 %v1923, %v1922
        %v1935 = vpack.c.b16 %v1925, %v1924
        %v1936 = vpack.c.b16 %v1927, %v1926
        %v1937 = vpack.c.b16 %v1929, %v1928
        %1946 = vmatprep.subr.bf16.mxu0 0
        %1947 = vmatpush1.bf16.msra.mxu0 %v1930
        %1948 = vmatprep.subr.bf16.mxu0 0
        %1949 = vmatpush1.bf16.msra.mxu0 %v1931
        %1950 = vmatprep.subr.bf16.mxu0 0
        %1951 = vmatpush1.bf16.msra.mxu0 %v1932
        %1952 = vmatprep.subr.bf16.mxu0 0
        %1953 = vmatpush1.bf16.msra.mxu0 %v1933
        %1954 = vmatprep.subr.bf16.mxu0 0
        %1955 = vmatpush1.bf16.msra.mxu0 %v1934
        %1956 = vmatprep.subr.bf16.mxu0 0
        %1957 = vmatpush1.bf16.msra.mxu0 %v1935
        %1958 = vmatprep.subr.bf16.mxu0 0
        %1959 = vmatpush1.bf16.msra.mxu0 %v1936
        %1960 = vmatprep.subr.bf16.mxu0 0
        %1961 = vmatpush1.bf16.msra.mxu0 %v1937
        %1962 = vmatprep.subr.bf16.mxu0 0
        %1963 = vmatpush1.bf16.msra.mxu0 0
        %1964 = vmatprep.subr.bf16.mxu0 0
        %1965 = vmatpush1.bf16.msra.mxu0 0
        %1966 = vmatprep.subr.bf16.mxu0 0
        %1967 = vmatpush1.bf16.msra.mxu0 0
        %1968 = vmatprep.subr.bf16.mxu0 0
        %1969 = vmatpush1.bf16.msra.mxu0 0
        %1970 = vmatprep.subr.bf16.mxu0 0
        %1971 = vmatpush1.bf16.msra.mxu0 0
        %1972 = vmatprep.subr.bf16.mxu0 0
        %1973 = vmatpush1.bf16.msra.mxu0 0
        %1974 = vmatprep.subr.bf16.mxu0 0
        %1975 = vmatpush1.bf16.msra.mxu0 0
        %1976 = vmatprep.subr.bf16.mxu0 0
        %1977 = vmatpush1.bf16.msra.mxu0 0
        %1978 = vmatprep.mubr.bf16.mxu0 0
        %1979 = vmatmul.mubr.bf16.gmra.mrb[0].mxu0 %v1877
        %v1980 = vpop.f32.mrb[0].mxu0
        %v1981 = vadd.f32 %v1897, %v1980
        %v1982 = vpop.f32.mrb[0].mxu0
        %v1983 = vpop.f32.mrb[0].mxu0
        %v1984 = vadd.f32 %v1897, %v1983
        %v1985 = vpop.f32.mrb[0].mxu0
        %1986 = vdwg.mxu0
        %v1987 = vadd.f32 %v1808, %v1981
        %v1988 = vadd.f32 %v1809, %v1984
        %v1989 = vsel %vm354, %v1987, 0.0
        %1990 = vadd.xlane.f32.xlu0 %v1989
        %v1991 = vpop.xlane.xlu0 %1990
        %v1992 = vsel %vm354, %v1988, 0.0
        %1993 = vadd.xlane.f32.xlu0 %v1992
        %v1994 = vpop.xlane.xlu0 %1993
        %v1995 = vmul.f32 %v1991, %v1777
        %v1996 = vmul.f32 %v1994, %v1777
        %v1997 = vsub.f32 %v1987, %v1995
        %v1998 = vsub.f32 %v1988, %v1996
        %v1999 = vmul.f32 %v1997, %v1997
        %v2000 = vmul.f32 %v1998, %v1998
        %v2001 = vsel %vm354, %v1999, 0.0
        %2002 = vadd.xlane.f32.xlu0 %v2001
        %v2003 = vpop.xlane.xlu0 %2002
        %v2004 = vsel %vm354, %v2000, 0.0
        %2005 = vadd.xlane.f32.xlu0 %v2004
        %v2006 = vpop.xlane.xlu0 %2005
        %v2007 = vmul.f32 %v2003, %v1777
        %v2008 = vmul.f32 %v2006, %v1777
        %v2009 = vadd.f32 %v2007, 1e-05
        %v2010 = vadd.f32 %v2008, 1e-05
        %v2011 = vrsqrt.pop %v2009
        %v2012 = vrsqrt.pop %v2010
        %v2013 = vmul.f32 %v1997, %v2011
        %v2014 = vmul.f32 %v1998, %v2012
        %v2015 = vlaneseq
        %v2016 = vshrl.u32 %v2015, 7
        %v2017 = vsub.s32 2, %v2016
        %v2018 = vrot.slane %v336, %v2017
        %v2019 = vmul.f32 %v2013, %v2018
        %v2020 = vmul.f32 %v2014, %v2018
        %v2021 = vlaneseq
        %v2022 = vshrl.u32 %v2021, 7
        %v2023 = vsub.s32 3, %v2022
        %v2024 = vrot.slane %v336, %v2023
        %v2025 = vadd.f32 %v2019, %v2024
        %v2026 = vadd.f32 %v2020, %v2024
        %2027 = vst.msk [vmem:[#allocation2] sm:$0xff] %vm354, %v2025
        %2028 = vst.msk [vmem:[#allocation2 + $0x8] sm:$0xff] %vm354, %v2026
        %p2029 = scmp.eq.s32.totalorder %s19, 1
        // Predicated region
        $region53: #{tpu_custom_call.1} parent=47 // pred_check
          %p2030 = pneg %p2029
        $region54: #{tpu_custom_call.1} parent=47 // pred_check_branch
          %2032 = sbr.rel (%p2030) target = $region56
        $region55: #{tpu_custom_call.1} parent=47 // pred_region
          %v2033 = vpack.c.bf16 %v2026, %v2025
          %v2034 = vld [vmem:[%s5] sm:$0xf]
          %v2035 = vld [vmem:[%s5 + $0x4] sm:$0xf]
          %v2036 = vld [vmem:[%s5 + $0x8] sm:$0xf]
          %v2037 = vld [vmem:[%s5 + $0xc] sm:$0xf]
          %v2038 = vld [vmem:[%s6] sm:$0x1]
          %v2040 = vlaneseq
          %v2041 = vshrl.u32 %v2040, 7
          %v2042 = vsub.s32 0, %v2041
          %v2043 = vrot.slane %v2038, %v2042
          %v2049 = vunpack.c.l.b16 %v2034
          %v2050 = vunpack.c.l.b16 %v2035
          %v2051 = vunpack.c.l.b16 %v2036
          %v2052 = vunpack.c.l.b16 %v2037
          %v2053 = vpack.c.b16 %v2050, %v2049
          %v2054 = vpack.c.b16 %v2052, %v2051
          %v2058 = vsel %vm354, %v2033, 0
          %2060 = vmatprep.subr.bf16.mxu0 0
          %2061 = vmatpush1.bf16.msra.mxu0 %v2053
          %2062 = vmatprep.subr.bf16.mxu0 0
          %2063 = vmatpush1.bf16.msra.mxu0 %v2054
          %2064 = vmatprep.subr.bf16.mxu0 0
          %2065 = vmatpush1.bf16.msra.mxu0 0
          %2066 = vmatprep.subr.bf16.mxu0 0
          %2067 = vmatpush1.bf16.msra.mxu0 0
          %2068 = vmatprep.subr.bf16.mxu0 0
          %2069 = vmatpush1.bf16.msra.mxu0 0
          %2070 = vmatprep.subr.bf16.mxu0 0
          %2071 = vmatpush1.bf16.msra.mxu0 0
          %2072 = vmatprep.subr.bf16.mxu0 0
          %2073 = vmatpush1.bf16.msra.mxu0 0
          %2074 = vmatprep.subr.bf16.mxu0 0
          %2075 = vmatpush1.bf16.msra.mxu0 0
          %2076 = vmatprep.subr.bf16.mxu0 0
          %2077 = vmatpush1.bf16.msra.mxu0 0
          %2078 = vmatprep.subr.bf16.mxu0 0
          %2079 = vmatpush1.bf16.msra.mxu0 0
          %2080 = vmatprep.subr.bf16.mxu0 0
          %2081 = vmatpush1.bf16.msra.mxu0 0
          %2082 = vmatprep.subr.bf16.mxu0 0
          %2083 = vmatpush1.bf16.msra.mxu0 0
          %2084 = vmatprep.subr.bf16.mxu0 0
          %2085 = vmatpush1.bf16.msra.mxu0 0
          %2086 = vmatprep.subr.bf16.mxu0 0
          %2087 = vmatpush1.bf16.msra.mxu0 0
          %2088 = vmatprep.subr.bf16.mxu0 0
          %2089 = vmatpush1.bf16.msra.mxu0 0
          %2090 = vmatprep.subr.bf16.mxu0 0
          %2091 = vmatpush1.bf16.msra.mxu0 0
          %2092 = vmatprep.mubr.bf16.mxu0 0
          %2093 = vmatmul.mubr.bf16.gmra.mrb[0].mxu0 %v2058
          %v2094 = vpop.f32.mrb[0].mxu0
          %v2095 = vadd.f32 %v2043, %v2094
          %v2096 = vpop.f32.mrb[0].mxu0
          %v2097 = vpop.f32.mrb[0].mxu0
          %v2098 = vadd.f32 %v2043, %v2097
          %v2099 = vpop.f32.mrb[0].mxu0
          %2100 = vdwg.mxu0
          %2101 = vst [vmem:[#allocation3] sm:$0xff] %v2095
          %2102 = vst [vmem:[#allocation3 + $0x8] sm:$0xff] %v2098
        $region56: #{tpu_custom_call.1} parent=47 // pred_fallthru
          _
        // Predicated region
        $region57: #{tpu_custom_call.1} parent=47 // pred_check
          %p2103 = pneg %p199
        $region58: #{tpu_custom_call.1} parent=47 // pred_check_branch
          %2105 = sbr.rel (%p2103) target = $region60
        $region59: #{tpu_custom_call.1} parent=47 // pred_region
          %s2107 = ssub.s32 256, 256
          %2108 = vsyncadd [#allocation4], %s2107
          %s2109 = sshll.u32 [#allocation3], 4
          %s2110 = int_to_ptr.vmem [resolvable:$true] %s2109
          %2115 = dma.vmem_to_hbm [thread:$0]  %s2110, 256, %s7, [#allocation4], 128, 128, 8
        $region60: #{tpu_custom_call.1} parent=47 // pred_fallthru
          _
        // Predicated region
        $region61: #{tpu_custom_call.1} parent=47 // pred_check
          %p2116 = pneg %p199
        $region62: #{tpu_custom_call.1} parent=47 // pred_check_branch
          %2118 = sbr.rel (%p2116) target = $region64
        $region63: #{tpu_custom_call.1} parent=47 // pred_region
          %2119 = dma.done [#allocation4], 256
        $region64: #{tpu_custom_call.1} parent=47 // pred_fallthru
          _
      $region48: #{tpu_custom_call.1} parent=5 // pred_fallthru
        _
      %p2120 = scmp.le.s32.totalorder 2, %s14
      // Predicated region
      $region65: #{tpu_custom_call.1} parent=5 // pred_check
        %p2121 = pneg %p2120
      $region66: #{tpu_custom_call.1} parent=5 // pred_check_branch
        %2123 = sbr.rel (%p2121) target = $region68
      $region67: #{tpu_custom_call.1} parent=5 // pred_region
        %s2124 = ssub.s32 %s14, 2
      $region68: #{tpu_custom_call.1} parent=5 // pred_fallthru
        _
    $region6: #{tpu_custom_call.1} parent=1 // loop_footer
      %s18 = sadd.s32 1, %s14
    $region7: #{tpu_custom_call.1} parent=1 // loop_footer_branch
      %13 = sbr.rel target = $region3
    $region8: #{tpu_custom_call.1} parent=1 // loop_exit
      _
    %2125 = vsyncpa [#allocation4], 1
    %s2126 = scalar_lea.sflag [#allocation4], 1
    %2127 = vsyncpa %s2126, 1

</llo_original>
